<compile_context>
chip_gen: v7x
topology: tpu7x:2x2x1
jax: 0.10.0
libtpu: 0.0.40
codegen_flags: <defaults>
</compile_context>

<pallas_src>
import jax
import jax.numpy as jnp
from jax import lax
from jax.experimental import pallas as pl
from jax.experimental.pallas import tpu as pltpu

# ---------------- model dimensions ----------------
BRANCH_DIM = 32   # number of input-function sensors
TRUNK_DIM = 2     # (x, t) query coordinate
HIDDEN = 64
LATENT = 64       # p: shared branch/trunk output width
FUSED = 2 * HIDDEN  # 128: branch half = rows 0:64, trunk half = rows 64:128


# ---------------------------------------------------------------------------
# kernel: one batch tile; feature-major intermediates (features on sublanes, batch on lanes)
# ---------------------------------------------------------------------------
def deeponet_kernel(u_ref, yt_ref, w1b_ref, w1t_ref, b1_ref,
                    w2_ref, b2_ref, w3_ref, b3_ref, nb_ref, out_ref):
    # ---- layer 1 ----
    # branch: [64,32]bf16 · [TILE_B,32]bf16ᵀ -> [64, TILE_B] f32 (MXU, f32 accumulate);
    # contraction over the feature axis of batch-major u, so no wrapper transpose is needed.
    hb = lax.dot_general(
        w1b_ref[...], u_ref[...].astype(jnp.bfloat16),
        dimension_numbers=(((1,), (1,)), ((), ())),
        preferred_element_type=jnp.float32)                               # [64, TILE_B]
    # trunk: K=2 contraction done on the VPU (two broadcast mul-adds), no tiny-K matmul
    w1t = w1t_ref[...]                                                    # [64, 2]  f32
    yt = yt_ref[...]                                                      # [2, TILE_B] f32
    ht = w1t[:, 0:1] * yt[0:1, :] + w1t[:, 1:2] * yt[1:2, :]              # [64, TILE_B]
    h = jnp.tanh(jnp.concatenate([hb, ht], axis=0) + b1_ref[...])         # [128, TILE_B]

    # ---- layers 2 & 3: fused block-diagonal 128-wide MLP (bf16 operands, f32 accumulation) ----
    h = jnp.tanh(jnp.dot(w2_ref[...], h.astype(jnp.bfloat16),
                         preferred_element_type=jnp.float32) + b2_ref[...])   # [128, TILE_B]
    h = jnp.dot(w3_ref[...], h.astype(jnp.bfloat16),
                preferred_element_type=jnp.float32) + b3_ref[...]             # [128, TILE_B]

    # ---- DeepONet head: sum_k B[k,b] * T[k,b]  (sublane reduction -> lane-dense row) ----
    prod = h[:LATENT, :] * h[LATENT:, :]                                  # [64, TILE_B]
    out_ref[...] = jnp.sum(prod, axis=0, keepdims=True) + nb_ref[0]       # [1, TILE_B]


# ---------------------------------------------------------------------------
# wrapper
# ---------------------------------------------------------------------------
def _round_up(x, m):
    return ((x + m - 1) // m) * m


def _choose_tile_b(batch, max_tile_b):
    """Multiple of 128 (lane-aligned blocks); keep >=2 grid tiles when the batch allows it so
    dimension_semantics=("parallel",) actually shards batch tiles over both v7x TensorCores."""
    half = _round_up(max(1, -(-batch // 2)), 128)
    return int(max(128, min(_round_up(max_tile_b, 128), half)))


def deeponet_forward(u, y, packed_params, *, max_tile_b=1024):
    w1b, w1t, b1, w2, b2, w3, b3, net_bias = packed_params
    batch = u.shape[0]
    tile_b = _choose_tile_b(batch, max_tile_b)
    n_tiles = pl.cdiv(batch, tile_b)

    u = u.astype(jnp.float32)            # passed batch-major, untouched -> no HBM round trip
    yt = y.astype(jnp.float32).T         # [2, batch]: tiny (8 B/row) layout plumbing only

    out = pl.pallas_call(
        deeponet_kernel,
        out_shape=jax.ShapeDtypeStruct((1, batch), jnp.float32),
        grid=(n_tiles,),
        in_specs=[
            pl.BlockSpec((tile_b, BRANCH_DIM), lambda i: (i, 0)),   # u, batch-tiled
            pl.BlockSpec((TRUNK_DIM, tile_b), lambda i: (0, i)),    # yᵀ, batch-tiled
            pl.BlockSpec(w1b.shape, lambda i: (0, 0)),              # resident weights / biases
            pl.BlockSpec(w1t.shape, lambda i: (0, 0)),
            pl.BlockSpec(b1.shape, lambda i: (0, 0)),
            pl.BlockSpec(w2.shape, lambda i: (0, 0)),
            pl.BlockSpec(b2.shape, lambda i: (0, 0)),
            pl.BlockSpec(w3.shape, lambda i: (0, 0)),
            pl.BlockSpec(b3.shape, lambda i: (0, 0)),
            pl.BlockSpec(memory_space=pltpu.MemorySpace.SMEM),      # net_bias scalar
        ],
        out_specs=pl.BlockSpec((1, tile_b), lambda i: (0, i)),      # lane-dense output row
        compiler_params=pltpu.CompilerParams(
            dimension_semantics=("parallel",)),                     # v7x: shard tiles over both TCs
    )(u, yt, w1b, w1t, b1, w2, b2, w3, b3, net_bias)

    return out.reshape(batch, 1)                                    # single-op epilogue


# ---------------------------------------------------------------------------
# parameters
# ---------------------------------------------------------------------------
def init_params(key):
    """Glorot-ish init of the natural-orientation (un-fused) f32 parameters."""
    def dense(k, fan_in, fan_out):
        kw, _ = jax.random.split(k)
        scale = jnp.sqrt(2.0 / (fan_in + fan_out)).astype(jnp.float32)
        w = scale * jax.random.normal(kw, (fan_in, fan_out), dtype=jnp.float32)
        b = jnp.zeros((1, fan_out), dtype=jnp.float32)
        return w, b

    ks = jax.random.split(key, 7)
    bw1, bb1 = dense(ks[0], BRANCH_DIM, HIDDEN)
    bw2, bb2 = dense(ks[1], HIDDEN, HIDDEN)
    bw3, bb3 = dense(ks[2], HIDDEN, LATENT)
    tw1, tb1 = dense(ks[3], TRUNK_DIM, HIDDEN)
    tw2, tb2 = dense(ks[4], HIDDEN, HIDDEN)
    tw3, tb3 = dense(ks[5], HIDDEN, LATENT)
    net_bias = jnp.zeros((1,), dtype=jnp.float32)   # nn.Parameter(torch.zeros([1]))
    return (bw1, bb1, bw2, bb2, bw3, bb3,
            tw1, tb1, tw2, tb2, tw3, tb3, net_bias)


def pack_params(params):
    """One-time packing: feature-major [out, in] weights, bf16 for MXU operands
    (trunk layer-1 weight stays f32: it is used on the VPU), f32 column biases,
    layers 2/3 fused block-diagonal across branch|trunk."""
    (bw1, bb1, bw2, bb2, bw3, bb3,
     tw1, tb1, tw2, tb2, tw3, tb3, net_bias) = params
    f32 = jnp.float32

    def blockdiag(a, b):
        top = jnp.concatenate([a, jnp.zeros((a.shape[0], b.shape[1]), f32)], axis=1)
        bot = jnp.concatenate([jnp.zeros((b.shape[0], a.shape[1]), f32), b], axis=1)
        return jnp.concatenate([top, bot], axis=0)

    w1b = bw1.T.astype(jnp.bfloat16)                               # [64, 32]  MXU operand
    w1t = tw1.T.astype(f32)                                        # [64, 2]   VPU operand
    b1 = jnp.concatenate([bb1, tb1], axis=1).T.astype(f32)         # [128, 1]

    w2 = blockdiag(bw2, tw2).T.astype(jnp.bfloat16)                # [128, 128]
    b2 = jnp.concatenate([bb2, tb2], axis=1).T.astype(f32)         # [128, 1]
    w3 = blockdiag(bw3, tw3).T.astype(jnp.bfloat16)                # [128, 128]
    b3 = jnp.concatenate([bb3, tb3], axis=1).T.astype(f32)         # [128, 1]

    return (w1b, w1t, b1, w2, b2, w3, b3, net_bias.astype(f32))


# ---------------------------------------------------------------------------
# pure-JAX f32 reference (matches the PyTorch module semantics)
# ---------------------------------------------------------------------------
def reference_forward(u, y, params):
    (bw1, bb1, bw2, bb2, bw3, bb3,
     tw1, tb1, tw2, tb2, tw3, tb3, net_bias) = params
    h = jnp.tanh(u @ bw1 + bb1)
    h = jnp.tanh(h @ bw2 + bb2)
    B = h @ bw3 + bb3
    t = jnp.tanh(y @ tw1 + tb1)
    t = jnp.tanh(t @ tw2 + tb2)
    T = t @ tw3 + tb3
    out = jnp.sum(B * T, axis=1) + net_bias[0]
    return out[:, None]


if __name__ == "__main__":
    key = jax.random.PRNGKey(0)
    k_u, k_y, k_p = jax.random.split(key, 3)

    BATCH = 600   # -> tile_b=384, 2 grid tiles (exercises megacore split + a partial last block)
    u = jax.random.normal(k_u, (BATCH, BRANCH_DIM), dtype=jnp.float32)
    y = jax.random.normal(k_y, (BATCH, TRUNK_DIM), dtype=jnp.float32)

    params = init_params(k_p)
    packed = pack_params(params)

    fwd = jax.jit(lambda u, y: deeponet_forward(u, y, packed))
    out = jax.block_until_ready(fwd(u, y))

    ref = reference_forward(u, y, params)
    assert out.shape == (BATCH, 1), out.shape
    max_err = float(jnp.max(jnp.abs(out - ref)))
    # bf16 MXU operands with f32 accumulation -> slightly looser tolerance than pure f32
    assert jnp.allclose(out, ref, atol=1e-1, rtol=1e-1), max_err

    print("KERNEL_OK")
</pallas_src>

<mosaic_0001>
module attributes {stable_mosaic.version = 11 : i64} {
  func.func @deeponet_kernel(%arg0: i32, %arg1: memref<384x32xf32, #tpu.memory_space<vmem>>, %arg2: memref<2x384xf32, #tpu.memory_space<vmem>>, %arg3: memref<64x32xbf16, #tpu.memory_space<vmem>>, %arg4: memref<64x2xf32, #tpu.memory_space<vmem>>, %arg5: memref<128x1xf32, #tpu.memory_space<vmem>>, %arg6: memref<128x128xbf16, #tpu.memory_space<vmem>>, %arg7: memref<128x1xf32, #tpu.memory_space<vmem>>, %arg8: memref<128x128xbf16, #tpu.memory_space<vmem>>, %arg9: memref<128x1xf32, #tpu.memory_space<vmem>>, %arg10: memref<1xf32, #tpu.memory_space<smem>>, %arg11: memref<1x384xf32, #tpu.memory_space<vmem>>) attributes {dimension_semantics = [#tpu.dimension_semantics<parallel>], iteration_bounds = array<i64: 2>, scalar_prefetch = 0 : i64, scratch_operands = 0 : i64, tpu.core_type = #tpu.core_type<tc>, window_params = [{transform_indices = @transform_0, window_bounds = array<i64: 384, 32>}, {transform_indices = @transform_1, window_bounds = array<i64: 2, 384>}, {pipeline_mode = #tpu.pipeline_mode<synchronous>, transform_indices = @transform_2, window_bounds = array<i64: 64, 32>}, {pipeline_mode = #tpu.pipeline_mode<synchronous>, transform_indices = @transform_3, window_bounds = array<i64: 64, 2>}, {pipeline_mode = #tpu.pipeline_mode<synchronous>, transform_indices = @transform_4, window_bounds = array<i64: 128, 1>}, {pipeline_mode = #tpu.pipeline_mode<synchronous>, transform_indices = @transform_5, window_bounds = array<i64: 128, 128>}, {pipeline_mode = #tpu.pipeline_mode<synchronous>, transform_indices = @transform_6, window_bounds = array<i64: 128, 1>}, {pipeline_mode = #tpu.pipeline_mode<synchronous>, transform_indices = @transform_7, window_bounds = array<i64: 128, 128>}, {pipeline_mode = #tpu.pipeline_mode<synchronous>, transform_indices = @transform_8, window_bounds = array<i64: 128, 1>}, {transform_indices = @transform_9, window_bounds = array<i64: 1>}, {transform_indices = @transform_10, window_bounds = array<i64: 1, 384>}]} {
    %c0 = arith.constant 0 : index
    %c0_0 = arith.constant 0 : index
    %0 = vector.load %arg3[%c0, %c0_0] : memref<64x32xbf16, #tpu.memory_space<vmem>>, vector<64x32xbf16>
    %c0_1 = arith.constant 0 : index
    %c0_2 = arith.constant 0 : index
    %1 = vector.load %arg1[%c0_1, %c0_2] : memref<384x32xf32, #tpu.memory_space<vmem>>, vector<384x32xf32>
    %2 = arith.truncf %1 : vector<384x32xf32> to vector<384x32xbf16>
    %cst = arith.constant dense<0.000000e+00> : vector<64x384xf32>
    %3 = tpu.matmul %0, %2, %cst {dimension_numbers = #tpu.dot_dimension_numbers<[1], [1], [0], [0], [0, 0, 1, 0], [], []>} : vector<64x32xbf16>, vector<384x32xbf16>, vector<64x384xf32> -> vector<64x384xf32>
    %c0_3 = arith.constant 0 : index
    %c0_4 = arith.constant 0 : index
    %4 = vector.load %arg4[%c0_3, %c0_4] : memref<64x2xf32, #tpu.memory_space<vmem>>, vector<64x2xf32>
    %c0_5 = arith.constant 0 : index
    %c0_6 = arith.constant 0 : index
    %5 = vector.load %arg2[%c0_5, %c0_6] : memref<2x384xf32, #tpu.memory_space<vmem>>, vector<2x384xf32>
    %6 = vector.extract_strided_slice %4 {offsets = [0, 0], sizes = [64, 1], strides = [1, 1]} : vector<64x2xf32> to vector<64x1xf32>
    %7 = vector.extract_strided_slice %5 {offsets = [0, 0], sizes = [1, 384], strides = [1, 1]} : vector<2x384xf32> to vector<1x384xf32>
    %8 = vector.broadcast %6 : vector<64x1xf32> to vector<64x384xf32>
    %9 = vector.broadcast %7 : vector<1x384xf32> to vector<64x384xf32>
    %10 = arith.mulf %8, %9 : vector<64x384xf32>
    %11 = vector.extract_strided_slice %4 {offsets = [0, 1], sizes = [64, 1], strides = [1, 1]} : vector<64x2xf32> to vector<64x1xf32>
    %12 = vector.extract_strided_slice %5 {offsets = [1, 0], sizes = [1, 384], strides = [1, 1]} : vector<2x384xf32> to vector<1x384xf32>
    %13 = vector.broadcast %11 : vector<64x1xf32> to vector<64x384xf32>
    %14 = vector.broadcast %12 : vector<1x384xf32> to vector<64x384xf32>
    %15 = arith.mulf %13, %14 : vector<64x384xf32>
    %16 = arith.addf %10, %15 : vector<64x384xf32>
    %17 = tpu.concatenate %3, %16 in 0 : vector<64x384xf32>, vector<64x384xf32> -> vector<128x384xf32>
    %c0_7 = arith.constant 0 : index
    %c0_8 = arith.constant 0 : index
    %18 = vector.load %arg5[%c0_7, %c0_8] : memref<128x1xf32, #tpu.memory_space<vmem>>, vector<128x1xf32>
    %19 = vector.broadcast %18 : vector<128x1xf32> to vector<128x384xf32>
    %20 = arith.addf %17, %19 : vector<128x384xf32>
    %21 = math.tanh %20 : vector<128x384xf32>
    %c0_9 = arith.constant 0 : index
    %c0_10 = arith.constant 0 : index
    %22 = vector.load %arg6[%c0_9, %c0_10] : memref<128x128xbf16, #tpu.memory_space<vmem>>, vector<128x128xbf16>
    %23 = arith.truncf %21 : vector<128x384xf32> to vector<128x384xbf16>
    %cst_11 = arith.constant dense<0.000000e+00> : vector<128x384xf32>
    %24 = tpu.matmul %22, %23, %cst_11 {dimension_numbers = #tpu.dot_dimension_numbers<[1], [0], [0], [1], [0, 0, 1, 1], [], []>} : vector<128x128xbf16>, vector<128x384xbf16>, vector<128x384xf32> -> vector<128x384xf32>
    %c0_12 = arith.constant 0 : index
    %c0_13 = arith.constant 0 : index
    %25 = vector.load %arg7[%c0_12, %c0_13] : memref<128x1xf32, #tpu.memory_space<vmem>>, vector<128x1xf32>
    %26 = vector.broadcast %25 : vector<128x1xf32> to vector<128x384xf32>
    %27 = arith.addf %24, %26 : vector<128x384xf32>
    %28 = math.tanh %27 : vector<128x384xf32>
    %c0_14 = arith.constant 0 : index
    %c0_15 = arith.constant 0 : index
    %29 = vector.load %arg8[%c0_14, %c0_15] : memref<128x128xbf16, #tpu.memory_space<vmem>>, vector<128x128xbf16>
    %30 = arith.truncf %28 : vector<128x384xf32> to vector<128x384xbf16>
    %cst_16 = arith.constant dense<0.000000e+00> : vector<128x384xf32>
    %31 = tpu.matmul %29, %30, %cst_16 {dimension_numbers = #tpu.dot_dimension_numbers<[1], [0], [0], [1], [0, 0, 1, 1], [], []>} : vector<128x128xbf16>, vector<128x384xbf16>, vector<128x384xf32> -> vector<128x384xf32>
    %c0_17 = arith.constant 0 : index
    %c0_18 = arith.constant 0 : index
    %32 = vector.load %arg9[%c0_17, %c0_18] : memref<128x1xf32, #tpu.memory_space<vmem>>, vector<128x1xf32>
    %33 = vector.broadcast %32 : vector<128x1xf32> to vector<128x384xf32>
    %34 = arith.addf %31, %33 : vector<128x384xf32>
    %35 = vector.extract_strided_slice %34 {offsets = [0, 0], sizes = [64, 384], strides = [1, 1]} : vector<128x384xf32> to vector<64x384xf32>
    %36 = vector.extract_strided_slice %34 {offsets = [64, 0], sizes = [64, 384], strides = [1, 1]} : vector<128x384xf32> to vector<64x384xf32>
    %37 = arith.mulf %35, %36 : vector<64x384xf32>
    %cst_19 = arith.constant dense<0.000000e+00> : vector<384xf32>
    %38 = vector.multi_reduction <add>, %37, %cst_19 [0] : vector<64x384xf32> to vector<384xf32>
    %39 = vector.shape_cast %38 : vector<384xf32> to vector<1x384xf32>
    %c0_20 = arith.constant 0 : index
    %40 = memref.load %arg10[%c0_20] : memref<1xf32, #tpu.memory_space<smem>>
    %41 = vector.broadcast %40 : f32 to vector<1x384xf32>
    %42 = arith.addf %39, %41 : vector<1x384xf32>
    %c0_21 = arith.constant 0 : index
    %c0_22 = arith.constant 0 : index
    %43 = vector.load %arg11[%c0_21, %c0_22] : memref<1x384xf32, #tpu.memory_space<vmem>>, vector<1x384xf32>
    tpu.vector_store %arg11[%c0_21, %c0_22], %42 {strides = array<i32>} : memref<1x384xf32, #tpu.memory_space<vmem>>, vector<1x384xf32>,
    return
  }
  func.func @transform_0(%arg0: i32) -> (i32, i32) {
    %c0_i32 = arith.constant 0 : i32
    %c0_i32_0 = arith.constant 0 : i32
    return %arg0, %c0_i32 : i32, i32
  }
  func.func @transform_1(%arg0: i32) -> (i32, i32) {
    %c0_i32 = arith.constant 0 : i32
    %c0_i32_0 = arith.constant 0 : i32
    return %c0_i32, %arg0 : i32, i32
  }
  func.func @transform_2(%arg0: i32) -> (i32, i32) {
    %c0_i32 = arith.constant 0 : i32
    %c0_i32_0 = arith.constant 0 : i32
    %c0_i32_1 = arith.constant 0 : i32
    return %c0_i32, %c0_i32_0 : i32, i32
  }
  func.func @transform_3(%arg0: i32) -> (i32, i32) {
    %c0_i32 = arith.constant 0 : i32
    %c0_i32_0 = arith.constant 0 : i32
    %c0_i32_1 = arith.constant 0 : i32
    return %c0_i32, %c0_i32_0 : i32, i32
  }
  func.func @transform_4(%arg0: i32) -> (i32, i32) {
    %c0_i32 = arith.constant 0 : i32
    %c0_i32_0 = arith.constant 0 : i32
    %c0_i32_1 = arith.constant 0 : i32
    return %c0_i32, %c0_i32_0 : i32, i32
  }
  func.func @transform_5(%arg0: i32) -> (i32, i32) {
    %c0_i32 = arith.constant 0 : i32
    %c0_i32_0 = arith.constant 0 : i32
    %c0_i32_1 = arith.constant 0 : i32
    return %c0_i32, %c0_i32_0 : i32, i32
  }
  func.func @transform_6(%arg0: i32) -> (i32, i32) {
    %c0_i32 = arith.constant 0 : i32
    %c0_i32_0 = arith.constant 0 : i32
    %c0_i32_1 = arith.constant 0 : i32
    return %c0_i32, %c0_i32_0 : i32, i32
  }
  func.func @transform_7(%arg0: i32) -> (i32, i32) {
    %c0_i32 = arith.constant 0 : i32
    %c0_i32_0 = arith.constant 0 : i32
    %c0_i32_1 = arith.constant 0 : i32
    return %c0_i32, %c0_i32_0 : i32, i32
  }
  func.func @transform_8(%arg0: i32) -> (i32, i32) {
    %c0_i32 = arith.constant 0 : i32
    %c0_i32_0 = arith.constant 0 : i32
    %c0_i32_1 = arith.constant 0 : i32
    return %c0_i32, %c0_i32_0 : i32, i32
  }
  func.func @transform_9(%arg0: i32) -> i32 {
    %c0_i32 = arith.constant 0 : i32
    %c0_i32_0 = arith.constant 0 : i32
    return %c0_i32 : i32
  }
  func.func @transform_10(%arg0: i32) -> (i32, i32) {
    %c0_i32 = arith.constant 0 : i32
    %c0_i32_0 = arith.constant 0 : i32
    return %c0_i32, %arg0 : i32, i32
  }
}

</mosaic_0001>

<llo_original>
// kernel: _lambda_.1
$region0: #{_lambda_.1}
  #allocation0 [shape = 'u32[]', space=smem, size = 0x4, offset = 0x4, fixed_abs, tag = 'smem constant byte address 0x4 - core index']
  #allocation1 [shape = 'u32[144,128]{1,0:T(1,128)}', space=vmem, size = 0x12000, scoped, tag = 'internal scratch']
  #allocation2 [shape = 'f32[1]{0:T(128)S(6)}', space=smem, size = 0x200, scoped, tag = 'scoped memory for _lambda_.1']
  %s0 = inlined_call_operand.vmem [shape: f32[600,32], index: 0, kind: input, shape index: {}]
  %s1 = inlined_call_operand.vmem [shape: f32[2,600], index: 1, kind: input, shape index: {}]
  %s2 = inlined_call_operand.vmem [shape: bf16[64,32], index: 2, kind: input, shape index: {}]
  %s3 = inlined_call_operand.vmem [shape: f32[64,2], index: 3, kind: input, shape index: {}]
  %s4 = inlined_call_operand.vmem [shape: f32[128,1], index: 4, kind: input, shape index: {}, may-alias: {4,6,8}]
  %s5 = inlined_call_operand.vmem [shape: bf16[128,128], index: 5, kind: input, shape index: {}]
  %s6 = inlined_call_operand.vmem [shape: f32[128,1], index: 6, kind: input, shape index: {}, may-alias: {4,6,8}]
  %s7 = inlined_call_operand.vmem [shape: bf16[128,128], index: 7, kind: input, shape index: {}]
  %s8 = inlined_call_operand.vmem [shape: f32[128,1], index: 8, kind: input, shape index: {}, may-alias: {4,6,8}]
  %s9 = inlined_call_operand.<no memory space> [shape: f32[1], index: 9, kind: input, shape index: {}]
  %s10 = inlined_call_operand.hbm [shape: f32[1,600], index: 10, kind: output, shape index: {}]
  %s11 = sld [smem:[#allocation0]]
  $region73: #{_lambda_.1} parent=0
    _
  %s13 = ssub.s32 1, %s11
  %s14 = scalar_select 0, %s13, %s11
  %15 = sst [smem:[#allocation2]] %s9
  $region1: #{_lambda_.1} parent=0
    #allocation3 [shape = 'u8[3072]{0}', space=vmem, size = 0xc00, scoped, tag = 'output window, operand 0']
    #allocation4 [shape = 's32[2]{0}', space=sflag, size = 0x8, scoped, tag = 'scoped memory for _lambda_.1']
    %16 = vsyncpa [#allocation4], 0
    %s17 = scalar_lea.sflag [#allocation4], 1
    %18 = vsyncpa %s17, 0
    loop: start=0, step=1, limit=4
    $region2: #{_lambda_.1} parent=1 // loop_pre_header
      _
    $region3: #{_lambda_.1} parent=1 // loop_header
      %s20 = sphi 0, %s24
      %p21 = scmp.ge.s32.totalorder %s20, 4
      %s30 = sphi 0, %s32
      %s33 = sphi 0, %s30
      %s34 = sphi 0, %s33
      %s50 = sphi 0, %s34
      %s56 = sphi 0, %s58
      %s59 = sphi 0, %s56
      %s60 = sphi 0, %s59
      %s76 = sphi 0, %s60
      %s80 = sphi 0, %s80
      %s82 = sphi 0, %s80
      %s83 = sphi 0, %s82
      %s97 = sphi 0, %s83
      %s101 = sphi 0, %s101
      %s103 = sphi 0, %s101
      %s104 = sphi 0, %s103
      %s118 = sphi 0, %s104
      %s122 = sphi 0, %s122
      %s124 = sphi 0, %s122
      %s125 = sphi 0, %s124
      %s139 = sphi 0, %s125
      %s143 = sphi 0, %s143
      %s145 = sphi 0, %s143
      %s146 = sphi 0, %s145
      %s160 = sphi 0, %s146
      %s164 = sphi 0, %s164
      %s166 = sphi 0, %s164
      %s167 = sphi 0, %s166
      %s181 = sphi 0, %s167
      %s185 = sphi 0, %s185
      %s187 = sphi 0, %s185
      %s188 = sphi 0, %s187
      %s202 = sphi 0, %s188
      %s206 = sphi 0, %s206
      %s208 = sphi 0, %s206
      %s209 = sphi 0, %s208
      %s223 = sphi 0, %s209
      %s227 = sphi 0, %s227
      %s229 = sphi 0, %s227
      %s230 = sphi 0, %s229
      %s244 = sphi 0, %s230
      %s250 = sphi 0, %s252
      %s253 = sphi 0, %s250
      %s254 = sphi 0, %s253
      %s270 = sphi 0, %s254
    $region4: #{_lambda_.1} parent=1 // loop_header_branch
      %23 = sbr.rel (%p21) target = $region8
    $region5: #{_lambda_.1} parent=1 // loop_body
      %s25 = ssub.s32 %s20, 1
      %s26 = ssub.s32 %s20, 2
      %s27 = sadd.s32 %s20, 1
      %s28 = ssub.s32 %s20, %s27
      %p29 = scmp.eq.s32.totalorder %s28, 0
      %s31 = sadd.s32 %s30, 1
      %s32 = scalar_select %p29, %s30, %s31
      %p35 = pneg %p29
      %p36 = scmp.eq.s32.totalorder %s20, 1
      %p37 = por %p35, %p36
      %p38 = scmp.ne.s32.totalorder %s30, %s33
      %p39 = scmp.eq.s32.totalorder %s20, 0
      %p40 = por %p38, %p39
      %p41 = scmp.ne.s32.totalorder %s30, %s33
      %p42 = scmp.eq.s32.totalorder %s25, 1
      %p43 = por %p41, %p42
      %p44 = scmp.ne.s32.totalorder %s33, %s34
      %p45 = scmp.eq.s32.totalorder %s25, 0
      %p46 = por %p44, %p45
      %p47 = scmp.ne.s32.totalorder %s33, %s34
      %p48 = scmp.eq.s32.totalorder %s26, 1
      %p49 = por %p47, %p48
      %p51 = scmp.ne.s32.totalorder %s34, %s50
      %p52 = scmp.eq.s32.totalorder %s26, 0
      %p53 = por %p51, %p52
      %s54 = ssub.s32 %s20, %s27
      %p55 = scmp.eq.s32.totalorder %s54, 0
      %s57 = sadd.s32 %s56, 1
      %s58 = scalar_select %p55, %s56, %s57
      %p61 = pneg %p55
      %p62 = scmp.eq.s32.totalorder %s20, 1
      %p63 = por %p61, %p62
      %p64 = scmp.ne.s32.totalorder %s56, %s59
      %p65 = scmp.eq.s32.totalorder %s20, 0
      %p66 = por %p64, %p65
      %p67 = scmp.ne.s32.totalorder %s56, %s59
      %p68 = scmp.eq.s32.totalorder %s25, 1
      %p69 = por %p67, %p68
      %p70 = scmp.ne.s32.totalorder %s59, %s60
      %p71 = scmp.eq.s32.totalorder %s25, 0
      %p72 = por %p70, %p71
      %p73 = scmp.ne.s32.totalorder %s59, %s60
      %p74 = scmp.eq.s32.totalorder %s26, 1
      %p75 = por %p73, %p74
      %p77 = scmp.ne.s32.totalorder %s60, %s76
      %p78 = scmp.eq.s32.totalorder %s26, 0
      %p79 = por %p77, %p78
      %s81 = sadd.s32 %s80, 1
      %p84 = scmp.eq.s32.totalorder %s20, 1
      %p85 = scmp.ne.s32.totalorder %s80, %s82
      %p86 = scmp.eq.s32.totalorder %s20, 0
      %p87 = por %p85, %p86
      %p88 = scmp.ne.s32.totalorder %s80, %s82
      %p89 = scmp.eq.s32.totalorder %s25, 1
      %p90 = por %p88, %p89
      %p91 = scmp.ne.s32.totalorder %s82, %s83
      %p92 = scmp.eq.s32.totalorder %s25, 0
      %p93 = por %p91, %p92
      %p94 = scmp.ne.s32.totalorder %s82, %s83
      %p95 = scmp.eq.s32.totalorder %s26, 1
      %p96 = por %p94, %p95
      %p98 = scmp.ne.s32.totalorder %s83, %s97
      %p99 = scmp.eq.s32.totalorder %s26, 0
      %p100 = por %p98, %p99
      %s102 = sadd.s32 %s101, 1
      %p105 = scmp.eq.s32.totalorder %s20, 1
      %p106 = scmp.ne.s32.totalorder %s101, %s103
      %p107 = scmp.eq.s32.totalorder %s20, 0
      %p108 = por %p106, %p107
      %p109 = scmp.ne.s32.totalorder %s101, %s103
      %p110 = scmp.eq.s32.totalorder %s25, 1
      %p111 = por %p109, %p110
      %p112 = scmp.ne.s32.totalorder %s103, %s104
      %p113 = scmp.eq.s32.totalorder %s25, 0
      %p114 = por %p112, %p113
      %p115 = scmp.ne.s32.totalorder %s103, %s104
      %p116 = scmp.eq.s32.totalorder %s26, 1
      %p117 = por %p115, %p116
      %p119 = scmp.ne.s32.totalorder %s104, %s118
      %p120 = scmp.eq.s32.totalorder %s26, 0
      %p121 = por %p119, %p120
      %s123 = sadd.s32 %s122, 1
      %p126 = scmp.eq.s32.totalorder %s20, 1
      %p127 = scmp.ne.s32.totalorder %s122, %s124
      %p128 = scmp.eq.s32.totalorder %s20, 0
      %p129 = por %p127, %p128
      %p130 = scmp.ne.s32.totalorder %s122, %s124
      %p131 = scmp.eq.s32.totalorder %s25, 1
      %p132 = por %p130, %p131
      %p133 = scmp.ne.s32.totalorder %s124, %s125
      %p134 = scmp.eq.s32.totalorder %s25, 0
      %p135 = por %p133, %p134
      %p136 = scmp.ne.s32.totalorder %s124, %s125
      %p137 = scmp.eq.s32.totalorder %s26, 1
      %p138 = por %p136, %p137
      %p140 = scmp.ne.s32.totalorder %s125, %s139
      %p141 = scmp.eq.s32.totalorder %s26, 0
      %p142 = por %p140, %p141
      %s144 = sadd.s32 %s143, 1
      %p147 = scmp.eq.s32.totalorder %s20, 1
      %p148 = scmp.ne.s32.totalorder %s143, %s145
      %p149 = scmp.eq.s32.totalorder %s20, 0
      %p150 = por %p148, %p149
      %p151 = scmp.ne.s32.totalorder %s143, %s145
      %p152 = scmp.eq.s32.totalorder %s25, 1
      %p153 = por %p151, %p152
      %p154 = scmp.ne.s32.totalorder %s145, %s146
      %p155 = scmp.eq.s32.totalorder %s25, 0
      %p156 = por %p154, %p155
      %p157 = scmp.ne.s32.totalorder %s145, %s146
      %p158 = scmp.eq.s32.totalorder %s26, 1
      %p159 = por %p157, %p158
      %p161 = scmp.ne.s32.totalorder %s146, %s160
      %p162 = scmp.eq.s32.totalorder %s26, 0
      %p163 = por %p161, %p162
      %s165 = sadd.s32 %s164, 1
      %p168 = scmp.eq.s32.totalorder %s20, 1
      %p169 = scmp.ne.s32.totalorder %s164, %s166
      %p170 = scmp.eq.s32.totalorder %s20, 0
      %p171 = por %p169, %p170
      %p172 = scmp.ne.s32.totalorder %s164, %s166
      %p173 = scmp.eq.s32.totalorder %s25, 1
      %p174 = por %p172, %p173
      %p175 = scmp.ne.s32.totalorder %s166, %s167
      %p176 = scmp.eq.s32.totalorder %s25, 0
      %p177 = por %p175, %p176
      %p178 = scmp.ne.s32.totalorder %s166, %s167
      %p179 = scmp.eq.s32.totalorder %s26, 1
      %p180 = por %p178, %p179
      %p182 = scmp.ne.s32.totalorder %s167, %s181
      %p183 = scmp.eq.s32.totalorder %s26, 0
      %p184 = por %p182, %p183
      %s186 = sadd.s32 %s185, 1
      %p189 = scmp.eq.s32.totalorder %s20, 1
      %p190 = scmp.ne.s32.totalorder %s185, %s187
      %p191 = scmp.eq.s32.totalorder %s20, 0
      %p192 = por %p190, %p191
      %p193 = scmp.ne.s32.totalorder %s185, %s187
      %p194 = scmp.eq.s32.totalorder %s25, 1
      %p195 = por %p193, %p194
      %p196 = scmp.ne.s32.totalorder %s187, %s188
      %p197 = scmp.eq.s32.totalorder %s25, 0
      %p198 = por %p196, %p197
      %p199 = scmp.ne.s32.totalorder %s187, %s188
      %p200 = scmp.eq.s32.totalorder %s26, 1
      %p201 = por %p199, %p200
      %p203 = scmp.ne.s32.totalorder %s188, %s202
      %p204 = scmp.eq.s32.totalorder %s26, 0
      %p205 = por %p203, %p204
      %s207 = sadd.s32 %s206, 1
      %p210 = scmp.eq.s32.totalorder %s20, 1
      %p211 = scmp.ne.s32.totalorder %s206, %s208
      %p212 = scmp.eq.s32.totalorder %s20, 0
      %p213 = por %p211, %p212
      %p214 = scmp.ne.s32.totalorder %s206, %s208
      %p215 = scmp.eq.s32.totalorder %s25, 1
      %p216 = por %p214, %p215
      %p217 = scmp.ne.s32.totalorder %s208, %s209
      %p218 = scmp.eq.s32.totalorder %s25, 0
      %p219 = por %p217, %p218
      %p220 = scmp.ne.s32.totalorder %s208, %s209
      %p221 = scmp.eq.s32.totalorder %s26, 1
      %p222 = por %p220, %p221
      %p224 = scmp.ne.s32.totalorder %s209, %s223
      %p225 = scmp.eq.s32.totalorder %s26, 0
      %p226 = por %p224, %p225
      %s228 = sadd.s32 %s227, 1
      %p231 = scmp.eq.s32.totalorder %s20, 1
      %p232 = scmp.ne.s32.totalorder %s227, %s229
      %p233 = scmp.eq.s32.totalorder %s20, 0
      %p234 = por %p232, %p233
      %p235 = scmp.ne.s32.totalorder %s227, %s229
      %p236 = scmp.eq.s32.totalorder %s25, 1
      %p237 = por %p235, %p236
      %p238 = scmp.ne.s32.totalorder %s229, %s230
      %p239 = scmp.eq.s32.totalorder %s25, 0
      %p240 = por %p238, %p239
      %p241 = scmp.ne.s32.totalorder %s229, %s230
      %p242 = scmp.eq.s32.totalorder %s26, 1
      %p243 = por %p241, %p242
      %p245 = scmp.ne.s32.totalorder %s230, %s244
      %p246 = scmp.eq.s32.totalorder %s26, 0
      %p247 = por %p245, %p246
      %s248 = ssub.s32 %s20, %s27
      %p249 = scmp.eq.s32.totalorder %s248, 0
      %s251 = sadd.s32 %s250, 1
      %s252 = scalar_select %p249, %s250, %s251
      %p255 = pneg %p249
      %p256 = scmp.eq.s32.totalorder %s20, 1
      %p257 = por %p255, %p256
      %p258 = scmp.ne.s32.totalorder %s250, %s253
      %p259 = scmp.eq.s32.totalorder %s20, 0
      %p260 = por %p258, %p259
      %p261 = scmp.ne.s32.totalorder %s250, %s253
      %p262 = scmp.eq.s32.totalorder %s25, 1
      %p263 = por %p261, %p262
      %p264 = scmp.ne.s32.totalorder %s253, %s254
      %p265 = scmp.eq.s32.totalorder %s25, 0
      %p266 = por %p264, %p265
      %p267 = scmp.ne.s32.totalorder %s253, %s254
      %p268 = scmp.eq.s32.totalorder %s26, 1
      %p269 = por %p267, %p268
      %p271 = scmp.ne.s32.totalorder %s254, %s270
      %p272 = scmp.eq.s32.totalorder %s26, 0
      %p273 = por %p271, %p272
      %p274 = scmp.le.s32.totalorder 1, %s20
      %p275 = scmp.lt.s32.totalorder %s20, 3
      %p276 = pnand %p274, %p275
      %p277 = pneg %p276
      // Predicated region
      $region9: #{_lambda_.1} parent=5 // pred_check
        _
      $region10: #{_lambda_.1} parent=5 // pred_check_branch
        %279 = sbr.rel (%p276) target = $region12
      $region11: #{_lambda_.1} parent=5 // pred_region
        %s280 = ssub.s32 %s20, 1
        // Predicated region
        $region13: #{_lambda_.1} parent=11 // pred_check
          %p281 = pneg %p93
        $region14: #{_lambda_.1} parent=11 // pred_check_branch
          %283 = sbr.rel (%p281) target = $region16
        $region15: #{_lambda_.1} parent=11 // pred_region
          _
        $region16: #{_lambda_.1} parent=11 // pred_fallthru
          _
        // Predicated region
        $region17: #{_lambda_.1} parent=11 // pred_check
          %p284 = pneg %p114
        $region18: #{_lambda_.1} parent=11 // pred_check_branch
          %286 = sbr.rel (%p284) target = $region20
        $region19: #{_lambda_.1} parent=11 // pred_region
          _
        $region20: #{_lambda_.1} parent=11 // pred_fallthru
          _
        // Predicated region
        $region21: #{_lambda_.1} parent=11 // pred_check
          %p287 = pneg %p135
        $region22: #{_lambda_.1} parent=11 // pred_check_branch
          %289 = sbr.rel (%p287) target = $region24
        $region23: #{_lambda_.1} parent=11 // pred_region
          _
        $region24: #{_lambda_.1} parent=11 // pred_fallthru
          _
        // Predicated region
        $region25: #{_lambda_.1} parent=11 // pred_check
          %p290 = pneg %p156
        $region26: #{_lambda_.1} parent=11 // pred_check_branch
          %292 = sbr.rel (%p290) target = $region28
        $region27: #{_lambda_.1} parent=11 // pred_region
          _
        $region28: #{_lambda_.1} parent=11 // pred_fallthru
          _
        // Predicated region
        $region29: #{_lambda_.1} parent=11 // pred_check
          %p293 = pneg %p177
        $region30: #{_lambda_.1} parent=11 // pred_check_branch
          %295 = sbr.rel (%p293) target = $region32
        $region31: #{_lambda_.1} parent=11 // pred_region
          _
        $region32: #{_lambda_.1} parent=11 // pred_fallthru
          _
        // Predicated region
        $region33: #{_lambda_.1} parent=11 // pred_check
          %p296 = pneg %p198
        $region34: #{_lambda_.1} parent=11 // pred_check_branch
          %298 = sbr.rel (%p296) target = $region36
        $region35: #{_lambda_.1} parent=11 // pred_region
          _
        $region36: #{_lambda_.1} parent=11 // pred_fallthru
          _
        // Predicated region
        $region37: #{_lambda_.1} parent=11 // pred_check
          %p299 = pneg %p219
        $region38: #{_lambda_.1} parent=11 // pred_check_branch
          %301 = sbr.rel (%p299) target = $region40
        $region39: #{_lambda_.1} parent=11 // pred_region
          _
        $region40: #{_lambda_.1} parent=11 // pred_fallthru
          _
        // Predicated region
        $region41: #{_lambda_.1} parent=11 // pred_check
          %p302 = pneg %p240
        $region42: #{_lambda_.1} parent=11 // pred_check_branch
          %304 = sbr.rel (%p302) target = $region44
        $region43: #{_lambda_.1} parent=11 // pred_region
          _
        $region44: #{_lambda_.1} parent=11 // pred_fallthru
          _
      $region12: #{_lambda_.1} parent=5 // pred_fallthru
        _
      %p305 = scmp.lt.s32.totalorder %s20, 2
      // Predicated region
      $region45: #{_lambda_.1} parent=5 // pred_check
        %p306 = pneg %p305
      $region46: #{_lambda_.1} parent=5 // pred_check_branch
        %308 = sbr.rel (%p306) target = $region48
      $region47: #{_lambda_.1} parent=5 // pred_region
        // Predicated region
        $region49: #{_lambda_.1} parent=47 // pred_check
          %p309 = pneg %p40
        $region50: #{_lambda_.1} parent=47 // pred_check_branch
          %311 = sbr.rel (%p309) target = $region52
        $region51: #{_lambda_.1} parent=47 // pred_region
          %s312 = smul.u32 48, %s20
          %s313 = ssub.s32 75, %s312
          %p314 = scmp.lt.s32.totalorder %s313, 48
          %s315 = scalar_select %p314, %s313, 48
          %s316 = smul.u32 128, %s315
          %p317 = scmp.lt.s32.totalorder %s312, 74
          %s318 = scalar_select %p317, %s312, 74
          %s319 = smul.addr %s318, 8
          %s320 = scalar_lea.vmem %s0, %s319
          %s321 = smul.u32 48, %s20
          %s322 = ssub.s32 75, %s321
          %p323 = scmp.lt.s32.totalorder %s322, 48
          %s324 = scalar_select %p323, %s322, 48
          %s325 = smul.u32 128, %s324
        $region52: #{_lambda_.1} parent=47 // pred_fallthru
          _
        // Predicated region
        $region53: #{_lambda_.1} parent=47 // pred_check
          %p326 = pneg %p66
        $region54: #{_lambda_.1} parent=47 // pred_check_branch
          %328 = sbr.rel (%p326) target = $region56
        $region55: #{_lambda_.1} parent=47 // pred_region
          %s329 = smul.u32 3, %s20
          %s330 = ssub.s32 5, %s329
          %p331 = scmp.lt.s32.totalorder %s330, 3
          %s332 = scalar_select %p331, %s330, 3
          %s333 = smul.u32 32, %s332
          %p334 = scmp.lt.s32.totalorder %s329, 4
          %s335 = scalar_select %p334, %s329, 4
          %s336 = smul.addr %s335, 2
          %s337 = scalar_lea.vmem %s1, %s336
          %s338 = smul.u32 3, %s20
          %s339 = ssub.s32 5, %s338
          %p340 = scmp.lt.s32.totalorder %s339, 3
          %s341 = scalar_select %p340, %s339, 3
          %s342 = smul.u32 32, %s341
        $region56: #{_lambda_.1} parent=47 // pred_fallthru
          _
      $region48: #{_lambda_.1} parent=5 // pred_fallthru
        _
      %p343 = scmp.le.s32.totalorder 1, %s20
      %p344 = scmp.lt.s32.totalorder %s20, 3
      %p345 = pnand %p343, %p344
      %p346 = pneg %p345
      // Predicated region
      $region57: #{_lambda_.1} parent=5 // pred_check
        _
      $region58: #{_lambda_.1} parent=5 // pred_check_branch
        %348 = sbr.rel (%p345) target = $region60
      $region59: #{_lambda_.1} parent=5 // pred_region
        %s349 = ssub.s32 %s20, 1
        %s350 = smul.u32 48, %s25
        %s351 = ssub.s32 75, %s350
        %p352 = scmp.lt.s32.totalorder %s351, 48
        %s353 = scalar_select %p352, %s351, 48
        %s354 = smul.u32 128, %s353
        %p355 = scmp.lt.s32.totalorder %s350, 74
        %s356 = scalar_select %p355, %s350, 74
        %s357 = smul.addr %s356, 8
        %s358 = scalar_lea.vmem %s0, %s357
        %p359 = pneg %p46
        %p360 = pneg %p43
        %s361 = smul.u32 3, %s25
        %s362 = ssub.s32 5, %s361
        %p363 = scmp.lt.s32.totalorder %s362, 3
        %s364 = scalar_select %p363, %s362, 3
        %s365 = smul.u32 32, %s364
        %p366 = scmp.lt.s32.totalorder %s361, 4
        %s367 = scalar_select %p366, %s361, 4
        %s368 = smul.addr %s367, 2
        %s369 = scalar_lea.vmem %s1, %s368
        %p370 = pneg %p72
        %p371 = pneg %p69
        %p372 = pneg %p93
        %p373 = pneg %p90
        %p374 = pneg %p114
        %p375 = pneg %p111
        %p376 = pneg %p135
        %p377 = pneg %p132
        %p378 = pneg %p156
        %p379 = pneg %p153
        %p380 = pneg %p177
        %p381 = pneg %p174
        %p382 = pneg %p198
        %p383 = pneg %p195
        %p384 = pneg %p219
        %p385 = pneg %p216
        %p386 = pneg %p240
        %p387 = pneg %p237
        %p388 = pneg %p266
        %p389 = pneg %p263
        %s390 = sand.u32 %s253, 1
        %s391 = scalar_lea.sflag [#allocation4], %s390
        %s392 = sand.u32 %s253, 1
        %s393 = smul.addr %s392, 3
        %s394 = scalar_lea.vmem [#allocation3], %s393
        %s395 = smul.u32 48, %s25
        %s396 = ssub.s32 75, %s395
        %p397 = scmp.lt.s32.totalorder %s396, 48
        %s398 = scalar_select %p397, %s396, 48
        %s399 = smul.u32 128, %s398
        %p400 = scmp.lt.s32.totalorder %s395, 74
        %s401 = scalar_select %p400, %s395, 74
        %s402 = smul.addr %s401, 8
        %s403 = scalar_lea.vmem %s0, %s402
        %s404 = smul.u32 48, %s25
        %s405 = ssub.s32 75, %s404
        %p406 = scmp.lt.s32.totalorder %s405, 48
        %s407 = scalar_select %p406, %s405, 48
        %s408 = smul.u32 128, %s407
        %s409 = smul.u32 3, %s25
        %s410 = ssub.s32 5, %s409
        %p411 = scmp.lt.s32.totalorder %s410, 3
        %s412 = scalar_select %p411, %s410, 3
        %s413 = smul.u32 32, %s412
        %p414 = scmp.lt.s32.totalorder %s409, 4
        %s415 = scalar_select %p414, %s409, 4
        %s416 = smul.addr %s415, 2
        %s417 = scalar_lea.vmem %s1, %s416
        %s418 = smul.u32 3, %s25
        %s419 = ssub.s32 5, %s418
        %p420 = scmp.lt.s32.totalorder %s419, 3
        %s421 = scalar_select %p420, %s419, 3
        %s422 = smul.u32 32, %s421
        %s423 = smul.u32 3, %s25
        %s424 = ssub.s32 5, %s423
        %p425 = scmp.lt.s32.totalorder %s424, 3
        %s426 = scalar_select %p425, %s424, 3
        %s427 = smul.u32 16, %s426
        %v429 = vld [vmem:[%s2] sm:$0xf]
        %v430 = vld [vmem:[%s2 + $0x4] sm:$0xf]
        %v431 = vld [vmem:[%s2 + $0x8] sm:$0xf]
        %v432 = vld [vmem:[%s2 + $0xc] sm:$0xf]
        %v433 = vld [vmem:[%s2 + $0x10] sm:$0xf]
        %v434 = vld [vmem:[%s2 + $0x14] sm:$0xf]
        %v435 = vld [vmem:[%s2 + $0x18] sm:$0xf]
        %v436 = vld [vmem:[%s2 + $0x1c] sm:$0xf]
        %v437 = vld [vmem:[%s403] sm:$0xff]
        %v438 = vld [vmem:[%s403 + $0x8] sm:$0xff]
        %v439 = vld [vmem:[%s403 + $0x10] sm:$0xff]
        %v440 = vld [vmem:[%s403 + $0x18] sm:$0xff]
        %v441 = vld [vmem:[%s403 + $0x20] sm:$0xff]
        %v442 = vld [vmem:[%s403 + $0x28] sm:$0xff]
        %v443 = vld [vmem:[%s403 + $0x30] sm:$0xff]
        %v444 = vld [vmem:[%s403 + $0x38] sm:$0xff]
        %v445 = vld [vmem:[%s403 + $0x40] sm:$0xff]
        %v446 = vld [vmem:[%s403 + $0x48] sm:$0xff]
        %v447 = vld [vmem:[%s403 + $0x50] sm:$0xff]
        %v448 = vld [vmem:[%s403 + $0x58] sm:$0xff]
        %v449 = vld [vmem:[%s403 + $0x60] sm:$0xff]
        %v450 = vld [vmem:[%s403 + $0x68] sm:$0xff]
        %v451 = vld [vmem:[%s403 + $0x70] sm:$0xff]
        %v452 = vld [vmem:[%s403 + $0x78] sm:$0xff]
        %v453 = vld [vmem:[%s403 + $0x80] sm:$0xff]
        %v454 = vld [vmem:[%s403 + $0x88] sm:$0xff]
        %v455 = vld [vmem:[%s403 + $0x90] sm:$0xff]
        %v456 = vld [vmem:[%s403 + $0x98] sm:$0xff]
        %v457 = vld [vmem:[%s403 + $0xa0] sm:$0xff]
        %v458 = vld [vmem:[%s403 + $0xa8] sm:$0xff]
        %v459 = vld [vmem:[%s403 + $0xb0] sm:$0xff]
        %v460 = vld [vmem:[%s403 + $0xb8] sm:$0xff]
        %v461 = vld [vmem:[%s403 + $0xc0] sm:$0xff]
        %v462 = vld [vmem:[%s403 + $0xc8] sm:$0xff]
        %v463 = vld [vmem:[%s403 + $0xd0] sm:$0xff]
        %v464 = vld [vmem:[%s403 + $0xd8] sm:$0xff]
        %v465 = vld [vmem:[%s403 + $0xe0] sm:$0xff]
        %v466 = vld [vmem:[%s403 + $0xe8] sm:$0xff]
        %v467 = vld [vmem:[%s403 + $0xf0] sm:$0xff]
        %v468 = vld [vmem:[%s403 + $0xf8] sm:$0xff]
        %v469 = vld [vmem:[%s403 + $0x100] sm:$0xff]
        %v470 = vld [vmem:[%s403 + $0x108] sm:$0xff]
        %v471 = vld [vmem:[%s403 + $0x110] sm:$0xff]
        %v472 = vld [vmem:[%s403 + $0x118] sm:$0xff]
        %v473 = vld [vmem:[%s403 + $0x120] sm:$0xff]
        %v474 = vld [vmem:[%s403 + $0x128] sm:$0xff]
        %v475 = vld [vmem:[%s403 + $0x130] sm:$0xff]
        %v476 = vld [vmem:[%s403 + $0x138] sm:$0xff]
        %v477 = vld [vmem:[%s403 + $0x140] sm:$0xff]
        %v478 = vld [vmem:[%s403 + $0x148] sm:$0xff]
        %v479 = vld [vmem:[%s403 + $0x150] sm:$0xff]
        %v480 = vld [vmem:[%s403 + $0x158] sm:$0xff]
        %v481 = vld [vmem:[%s403 + $0x160] sm:$0xff]
        %v482 = vld [vmem:[%s403 + $0x168] sm:$0xff]
        %v483 = vld [vmem:[%s403 + $0x170] sm:$0xff]
        %v484 = vld [vmem:[%s403 + $0x178] sm:$0xff]
        %v485 = vpack.c.bf16 %v438, %v437
        %v486 = vpack.c.bf16 %v440, %v439
        %v487 = vpack.c.bf16 %v442, %v441
        %v488 = vpack.c.bf16 %v444, %v443
        %v489 = vpack.c.bf16 %v446, %v445
        %v490 = vpack.c.bf16 %v448, %v447
        %v491 = vpack.c.bf16 %v450, %v449
        %v492 = vpack.c.bf16 %v452, %v451
        %v493 = vpack.c.bf16 %v454, %v453
        %v494 = vpack.c.bf16 %v456, %v455
        %v495 = vpack.c.bf16 %v458, %v457
        %v496 = vpack.c.bf16 %v460, %v459
        %v497 = vpack.c.bf16 %v462, %v461
        %v498 = vpack.c.bf16 %v464, %v463
        %v499 = vpack.c.bf16 %v466, %v465
        %v500 = vpack.c.bf16 %v468, %v467
        %v501 = vpack.c.bf16 %v470, %v469
        %v502 = vpack.c.bf16 %v472, %v471
        %v503 = vpack.c.bf16 %v474, %v473
        %v504 = vpack.c.bf16 %v476, %v475
        %v505 = vpack.c.bf16 %v478, %v477
        %v506 = vpack.c.bf16 %v480, %v479
        %v507 = vpack.c.bf16 %v482, %v481
        %v508 = vpack.c.bf16 %v484, %v483
        %v517 = vunpack.c.l.b16 %v429
        %v518 = vunpack.c.l.b16 %v430
        %v519 = vunpack.c.l.b16 %v431
        %v520 = vunpack.c.l.b16 %v432
        %v521 = vunpack.c.l.b16 %v433
        %v522 = vunpack.c.l.b16 %v434
        %v523 = vunpack.c.l.b16 %v435
        %v524 = vunpack.c.l.b16 %v436
        %v525 = vpack.c.b16 %v518, %v517
        %v526 = vpack.c.b16 %v520, %v519
        %v527 = vpack.c.b16 %v522, %v521
        %v528 = vpack.c.b16 %v524, %v523
        %vm529 = vcmask 261120
        %v531 = vsel %vm529, %v525, 0
        %v534 = vsel %vm529, %v526, 0
        %v537 = vsel %vm529, %v527, 0
        %v540 = vsel %vm529, %v528, 0
        %v543 = vsel %vm529, %v485, 0
        %v546 = vsel %vm529, %v486, 0
        %v549 = vsel %vm529, %v487, 0
        %v552 = vsel %vm529, %v488, 0
        %v555 = vsel %vm529, %v489, 0
        %v558 = vsel %vm529, %v490, 0
        %v561 = vsel %vm529, %v491, 0
        %v564 = vsel %vm529, %v492, 0
        %v567 = vsel %vm529, %v493, 0
        %v570 = vsel %vm529, %v494, 0
        %v573 = vsel %vm529, %v495, 0
        %v576 = vsel %vm529, %v496, 0
        %v579 = vsel %vm529, %v497, 0
        %v582 = vsel %vm529, %v498, 0
        %v585 = vsel %vm529, %v499, 0
        %v588 = vsel %vm529, %v500, 0
        %v591 = vsel %vm529, %v501, 0
        %v594 = vsel %vm529, %v502, 0
        %v597 = vsel %vm529, %v503, 0
        %v600 = vsel %vm529, %v504, 0
        %v603 = vsel %vm529, %v505, 0
        %v606 = vsel %vm529, %v506, 0
        %v609 = vsel %vm529, %v507, 0
        %v612 = vsel %vm529, %v508, 0
        %614 = vmatprep.subr.bf16.mxu0 0
        %615 = vmatpush1.bf16.xpose.msra.mxu0 %v543
        %616 = vmatprep.subr.bf16.mxu0 0
        %617 = vmatpush1.bf16.xpose.msra.mxu0 %v546
        %618 = vmatprep.subr.bf16.mxu0 0
        %619 = vmatpush1.bf16.xpose.msra.mxu0 %v549
        %620 = vmatprep.subr.bf16.mxu0 0
        %621 = vmatpush1.bf16.xpose.msra.mxu0 %v552
        %622 = vmatprep.subr.bf16.mxu0 0
        %623 = vmatpush1.bf16.xpose.msra.mxu0 %v555
        %624 = vmatprep.subr.bf16.mxu0 0
        %625 = vmatpush1.bf16.xpose.msra.mxu0 %v558
        %626 = vmatprep.subr.bf16.mxu0 0
        %627 = vmatpush1.bf16.xpose.msra.mxu0 %v561
        %628 = vmatprep.subr.bf16.mxu0 0
        %629 = vmatpush1.bf16.xpose.msra.mxu0 %v564
        %630 = vmatprep.subr.bf16.mxu0 0
        %631 = vmatpush1.bf16.xpose.msra.mxu0 %v567
        %632 = vmatprep.subr.bf16.mxu0 0
        %633 = vmatpush1.bf16.xpose.msra.mxu0 %v570
        %634 = vmatprep.subr.bf16.mxu0 0
        %635 = vmatpush1.bf16.xpose.msra.mxu0 %v573
        %636 = vmatprep.subr.bf16.mxu0 0
        %637 = vmatpush1.bf16.xpose.msra.mxu0 %v576
        %638 = vmatprep.subr.bf16.mxu0 0
        %639 = vmatpush1.bf16.xpose.msra.mxu0 %v579
        %640 = vmatprep.subr.bf16.mxu0 0
        %641 = vmatpush1.bf16.xpose.msra.mxu0 %v582
        %642 = vmatprep.subr.bf16.mxu0 0
        %643 = vmatpush1.bf16.xpose.msra.mxu0 %v585
        %644 = vmatprep.subr.bf16.mxu0 0
        %645 = vmatpush1.bf16.xpose.msra.mxu0 %v588
        %646 = vmatprep.mubr.bf16.mxu0 0
        %647 = vmatmul.mubr.bf16.gmra.mrb[0].mxu0 %v531
        %v648 = vpop.f32.mrb[0].mxu0
        %v649 = vadd.f32 0.0, %v648
        %v650 = vpop.f32.mrb[0].mxu0
        %v651 = vadd.f32 0.0, %v650
        %v652 = vpop.f32.mrb[0].mxu0
        %v653 = vadd.f32 0.0, %v652
        %v654 = vpop.f32.mrb[0].mxu0
        %v655 = vadd.f32 0.0, %v654
        %656 = vmatprep.mubr.bf16.mxu0 0
        %657 = vmatmul.mubr.bf16.gmra.mrb[0].mxu0 %v534
        %v658 = vpop.f32.mrb[0].mxu0
        %v659 = vadd.f32 0.0, %v658
        %v660 = vpop.f32.mrb[0].mxu0
        %v661 = vadd.f32 0.0, %v660
        %v662 = vpop.f32.mrb[0].mxu0
        %v663 = vadd.f32 0.0, %v662
        %v664 = vpop.f32.mrb[0].mxu0
        %v665 = vadd.f32 0.0, %v664
        %666 = vmatprep.mubr.bf16.mxu0 0
        %667 = vmatmul.mubr.bf16.gmra.mrb[0].mxu0 %v537
        %v668 = vpop.f32.mrb[0].mxu0
        %v669 = vadd.f32 0.0, %v668
        %v670 = vpop.f32.mrb[0].mxu0
        %v671 = vadd.f32 0.0, %v670
        %v672 = vpop.f32.mrb[0].mxu0
        %v673 = vadd.f32 0.0, %v672
        %v674 = vpop.f32.mrb[0].mxu0
        %v675 = vadd.f32 0.0, %v674
        %676 = vmatprep.mubr.bf16.mxu0 0
        %677 = vmatmul.mubr.bf16.gmra.mrb[0].mxu0 %v540
        %v678 = vpop.f32.mrb[0].mxu0
        %v679 = vadd.f32 0.0, %v678
        %v680 = vpop.f32.mrb[0].mxu0
        %v681 = vadd.f32 0.0, %v680
        %v682 = vpop.f32.mrb[0].mxu0
        %v683 = vadd.f32 0.0, %v682
        %v684 = vpop.f32.mrb[0].mxu0
        %v685 = vadd.f32 0.0, %v684
        %686 = vdwg.mxu0
        %687 = vmatprep.subr.bf16.mxu0 0
        %688 = vmatpush1.bf16.xpose.msra.mxu0 %v591
        %689 = vmatprep.subr.bf16.mxu0 0
        %690 = vmatpush1.bf16.xpose.msra.mxu0 %v594
        %691 = vmatprep.subr.bf16.mxu0 0
        %692 = vmatpush1.bf16.xpose.msra.mxu0 %v597
        %693 = vmatprep.subr.bf16.mxu0 0
        %694 = vmatpush1.bf16.xpose.msra.mxu0 %v600
        %695 = vmatprep.subr.bf16.mxu0 0
        %696 = vmatpush1.bf16.xpose.msra.mxu0 %v603
        %697 = vmatprep.subr.bf16.mxu0 0
        %698 = vmatpush1.bf16.xpose.msra.mxu0 %v606
        %699 = vmatprep.subr.bf16.mxu0 0
        %700 = vmatpush1.bf16.xpose.msra.mxu0 %v609
        %701 = vmatprep.subr.bf16.mxu0 0
        %702 = vmatpush1.bf16.xpose.msra.mxu0 %v612
        %703 = vmatprep.subr.bf16.mxu0 0
        %704 = vmatpush1.bf16.xpose.msra.mxu0 0
        %705 = vmatprep.subr.bf16.mxu0 0
        %706 = vmatpush1.bf16.xpose.msra.mxu0 0
        %707 = vmatprep.subr.bf16.mxu0 0
        %708 = vmatpush1.bf16.xpose.msra.mxu0 0
        %709 = vmatprep.subr.bf16.mxu0 0
        %710 = vmatpush1.bf16.xpose.msra.mxu0 0
        %711 = vmatprep.subr.bf16.mxu0 0
        %712 = vmatpush1.bf16.xpose.msra.mxu0 0
        %713 = vmatprep.subr.bf16.mxu0 0
        %714 = vmatpush1.bf16.xpose.msra.mxu0 0
        %715 = vmatprep.subr.bf16.mxu0 0
        %716 = vmatpush1.bf16.xpose.msra.mxu0 0
        %717 = vmatprep.subr.bf16.mxu0 0
        %718 = vmatpush1.bf16.xpose.msra.mxu0 0
        %719 = vmatprep.mubr.bf16.mxu0 0
        %720 = vmatmul.mubr.bf16.gmra.mrb[0].mxu0 %v531
        %v721 = vpop.f32.mrb[0].mxu0
        %v722 = vadd.f32 0.0, %v721
        %v723 = vpop.f32.mrb[0].mxu0
        %v724 = vpop.f32.mrb[0].mxu0
        %v725 = vadd.f32 0.0, %v724
        %v726 = vpop.f32.mrb[0].mxu0
        %727 = vmatprep.mubr.bf16.mxu0 0
        %728 = vmatmul.mubr.bf16.gmra.mrb[0].mxu0 %v534
        %v729 = vpop.f32.mrb[0].mxu0
        %v730 = vadd.f32 0.0, %v729
        %v731 = vpop.f32.mrb[0].mxu0
        %v732 = vpop.f32.mrb[0].mxu0
        %v733 = vadd.f32 0.0, %v732
        %v734 = vpop.f32.mrb[0].mxu0
        %735 = vmatprep.mubr.bf16.mxu0 0
        %736 = vmatmul.mubr.bf16.gmra.mrb[0].mxu0 %v537
        %v737 = vpop.f32.mrb[0].mxu0
        %v738 = vadd.f32 0.0, %v737
        %v739 = vpop.f32.mrb[0].mxu0
        %v740 = vpop.f32.mrb[0].mxu0
        %v741 = vadd.f32 0.0, %v740
        %v742 = vpop.f32.mrb[0].mxu0
        %743 = vmatprep.mubr.bf16.mxu0 0
        %744 = vmatmul.mubr.bf16.gmra.mrb[0].mxu0 %v540
        %v745 = vpop.f32.mrb[0].mxu0
        %v746 = vadd.f32 0.0, %v745
        %v747 = vpop.f32.mrb[0].mxu0
        %v748 = vpop.f32.mrb[0].mxu0
        %v749 = vadd.f32 0.0, %v748
        %v750 = vpop.f32.mrb[0].mxu0
        %751 = vdwg.mxu0
        %v752 = vld [vmem:[%s3] sm:$0xff]
        %v753 = vld [vmem:[%s3 + $0x8] sm:$0xff]
        %v754 = vld [vmem:[%s3 + $0x10] sm:$0xff]
        %v755 = vld [vmem:[%s3 + $0x18] sm:$0xff]
        %v756 = vld [vmem:[%s3 + $0x20] sm:$0xff]
        %v757 = vld [vmem:[%s3 + $0x28] sm:$0xff]
        %v758 = vld [vmem:[%s3 + $0x30] sm:$0xff]
        %v759 = vld [vmem:[%s3 + $0x38] sm:$0xff]
        %v760 = vld [vmem:[%s417] sm:$0x3f]
        %762 = vset.pattern.permute.xlu0 0
        %763 = vperm.xlu0 %762, %v752
        %v764 = vpop.permute.xlu0 %763
        %767 = vset.pattern.permute.xlu0 0
        %768 = vperm.xlu0 %767, %v753
        %v769 = vpop.permute.xlu0 %768
        %772 = vset.pattern.permute.xlu0 0
        %773 = vperm.xlu0 %772, %v754
        %v774 = vpop.permute.xlu0 %773
        %777 = vset.pattern.permute.xlu0 0
        %778 = vperm.xlu0 %777, %v755
        %v779 = vpop.permute.xlu0 %778
        %782 = vset.pattern.permute.xlu0 0
        %783 = vperm.xlu0 %782, %v756
        %v784 = vpop.permute.xlu0 %783
        %787 = vset.pattern.permute.xlu0 0
        %788 = vperm.xlu0 %787, %v757
        %v789 = vpop.permute.xlu0 %788
        %792 = vset.pattern.permute.xlu0 0
        %793 = vperm.xlu0 %792, %v758
        %v794 = vpop.permute.xlu0 %793
        %797 = vset.pattern.permute.xlu0 0
        %798 = vperm.xlu0 %797, %v759
        %v799 = vpop.permute.xlu0 %798
        %v802 = vlaneseq
        %v803 = vshrl.u32 %v802, 7
        %v804 = vsub.s32 0, %v803
        %v805 = vrot.slane %v760, %v804
        %v806 = vlaneseq
        %v807 = vshrl.u32 %v806, 7
        %v808 = vsub.s32 2, %v807
        %v809 = vrot.slane %v760, %v808
        %v810 = vlaneseq
        %v811 = vshrl.u32 %v810, 7
        %v812 = vsub.s32 4, %v811
        %v813 = vrot.slane %v760, %v812
        %v817 = vlaneseq
        %v818 = vshrl.u32 %v817, 7
        %v819 = vsub.s32 0, %v818
        %v820 = vrot.slane %v805, %v819
        %v821 = vlaneseq
        %v822 = vshrl.u32 %v821, 7
        %v823 = vsub.s32 0, %v822
        %v824 = vrot.slane %v809, %v823
        %v825 = vlaneseq
        %v826 = vshrl.u32 %v825, 7
        %v827 = vsub.s32 0, %v826
        %v828 = vrot.slane %v813, %v827
        %v829 = vmul.f32 %v764, %v820
        %v830 = vmul.f32 %v764, %v824
        %v831 = vmul.f32 %v764, %v828
        %v832 = vmul.f32 %v769, %v820
        %v833 = vmul.f32 %v769, %v824
        %v834 = vmul.f32 %v769, %v828
        %v835 = vmul.f32 %v774, %v820
        %v836 = vmul.f32 %v774, %v824
        %v837 = vmul.f32 %v774, %v828
        %v838 = vmul.f32 %v779, %v820
        %v839 = vmul.f32 %v779, %v824
        %v840 = vmul.f32 %v779, %v828
        %v841 = vmul.f32 %v784, %v820
        %v842 = vmul.f32 %v784, %v824
        %v843 = vmul.f32 %v784, %v828
        %v844 = vmul.f32 %v789, %v820
        %v845 = vmul.f32 %v789, %v824
        %v846 = vmul.f32 %v789, %v828
        %v847 = vmul.f32 %v794, %v820
        %v848 = vmul.f32 %v794, %v824
        %v849 = vmul.f32 %v794, %v828
        %v850 = vmul.f32 %v799, %v820
        %v851 = vmul.f32 %v799, %v824
        %v852 = vmul.f32 %v799, %v828
        %853 = vset.pattern.permute.xlu0 1
        %854 = vperm.xlu0 %853, %v752
        %v855 = vpop.permute.xlu0 %854
        %857 = vset.pattern.permute.xlu0 1
        %858 = vperm.xlu0 %857, %v753
        %v859 = vpop.permute.xlu0 %858
        %861 = vset.pattern.permute.xlu0 1
        %862 = vperm.xlu0 %861, %v754
        %v863 = vpop.permute.xlu0 %862
        %865 = vset.pattern.permute.xlu0 1
        %866 = vperm.xlu0 %865, %v755
        %v867 = vpop.permute.xlu0 %866
        %869 = vset.pattern.permute.xlu0 1
        %870 = vperm.xlu0 %869, %v756
        %v871 = vpop.permute.xlu0 %870
        %873 = vset.pattern.permute.xlu0 1
        %874 = vperm.xlu0 %873, %v757
        %v875 = vpop.permute.xlu0 %874
        %877 = vset.pattern.permute.xlu0 1
        %878 = vperm.xlu0 %877, %v758
        %v879 = vpop.permute.xlu0 %878
        %881 = vset.pattern.permute.xlu0 1
        %882 = vperm.xlu0 %881, %v759
        %v883 = vpop.permute.xlu0 %882
        %v885 = vlaneseq
        %v886 = vshrl.u32 %v885, 7
        %v887 = vsub.s32 1, %v886
        %v888 = vrot.slane %v760, %v887
        %v889 = vlaneseq
        %v890 = vshrl.u32 %v889, 7
        %v891 = vsub.s32 3, %v890
        %v892 = vrot.slane %v760, %v891
        %v893 = vlaneseq
        %v894 = vshrl.u32 %v893, 7
        %v895 = vsub.s32 5, %v894
        %v896 = vrot.slane %v760, %v895
        %v900 = vlaneseq
        %v901 = vshrl.u32 %v900, 7
        %v902 = vsub.s32 1, %v901
        %v903 = vrot.slane %v888, %v902
        %v904 = vlaneseq
        %v905 = vshrl.u32 %v904, 7
        %v906 = vsub.s32 1, %v905
        %v907 = vrot.slane %v892, %v906
        %v908 = vlaneseq
        %v909 = vshrl.u32 %v908, 7
        %v910 = vsub.s32 1, %v909
        %v911 = vrot.slane %v896, %v910
        %v912 = vmul.f32 %v855, %v903
        %v913 = vmul.f32 %v855, %v907
        %v914 = vmul.f32 %v855, %v911
        %v915 = vmul.f32 %v859, %v903
        %v916 = vmul.f32 %v859, %v907
        %v917 = vmul.f32 %v859, %v911
        %v918 = vmul.f32 %v863, %v903
        %v919 = vmul.f32 %v863, %v907
        %v920 = vmul.f32 %v863, %v911
        %v921 = vmul.f32 %v867, %v903
        %v922 = vmul.f32 %v867, %v907
        %v923 = vmul.f32 %v867, %v911
        %v924 = vmul.f32 %v871, %v903
        %v925 = vmul.f32 %v871, %v907
        %v926 = vmul.f32 %v871, %v911
        %v927 = vmul.f32 %v875, %v903
        %v928 = vmul.f32 %v875, %v907
        %v929 = vmul.f32 %v875, %v911
        %v930 = vmul.f32 %v879, %v903
        %v931 = vmul.f32 %v879, %v907
        %v932 = vmul.f32 %v879, %v911
        %v933 = vmul.f32 %v883, %v903
        %v934 = vmul.f32 %v883, %v907
        %v935 = vmul.f32 %v883, %v911
        %v936 = vadd.f32 %v829, %v912
        %v937 = vadd.f32 %v830, %v913
        %v938 = vadd.f32 %v831, %v914
        %v939 = vadd.f32 %v832, %v915
        %v940 = vadd.f32 %v833, %v916
        %v941 = vadd.f32 %v834, %v917
        %v942 = vadd.f32 %v835, %v918
        %v943 = vadd.f32 %v836, %v919
        %v944 = vadd.f32 %v837, %v920
        %v945 = vadd.f32 %v838, %v921
        %v946 = vadd.f32 %v839, %v922
        %v947 = vadd.f32 %v840, %v923
        %v948 = vadd.f32 %v841, %v924
        %v949 = vadd.f32 %v842, %v925
        %v950 = vadd.f32 %v843, %v926
        %v951 = vadd.f32 %v844, %v927
        %v952 = vadd.f32 %v845, %v928
        %v953 = vadd.f32 %v846, %v929
        %v954 = vadd.f32 %v847, %v930
        %v955 = vadd.f32 %v848, %v931
        %v956 = vadd.f32 %v849, %v932
        %v957 = vadd.f32 %v850, %v933
        %v958 = vadd.f32 %v851, %v934
        %v959 = vadd.f32 %v852, %v935
        %v960 = vld [vmem:[%s4] sm:$0xff]
        %v961 = vld [vmem:[%s4 + $0x8] sm:$0xff]
        %v962 = vld [vmem:[%s4 + $0x10] sm:$0xff]
        %v963 = vld [vmem:[%s4 + $0x18] sm:$0xff]
        %v964 = vld [vmem:[%s4 + $0x20] sm:$0xff]
        %v965 = vld [vmem:[%s4 + $0x28] sm:$0xff]
        %v966 = vld [vmem:[%s4 + $0x30] sm:$0xff]
        %v967 = vld [vmem:[%s4 + $0x38] sm:$0xff]
        %v968 = vld [vmem:[%s4 + $0x40] sm:$0xff]
        %v969 = vld [vmem:[%s4 + $0x48] sm:$0xff]
        %v970 = vld [vmem:[%s4 + $0x50] sm:$0xff]
        %v971 = vld [vmem:[%s4 + $0x58] sm:$0xff]
        %v972 = vld [vmem:[%s4 + $0x60] sm:$0xff]
        %v973 = vld [vmem:[%s4 + $0x68] sm:$0xff]
        %v974 = vld [vmem:[%s4 + $0x70] sm:$0xff]
        %v975 = vld [vmem:[%s4 + $0x78] sm:$0xff]
        %977 = vset.pattern.permute.xlu0 0
        %978 = vperm.xlu0 %977, %v960
        %v979 = vpop.permute.xlu0 %978
        %982 = vset.pattern.permute.xlu0 0
        %983 = vperm.xlu0 %982, %v961
        %v984 = vpop.permute.xlu0 %983
        %987 = vset.pattern.permute.xlu0 0
        %988 = vperm.xlu0 %987, %v962
        %v989 = vpop.permute.xlu0 %988
        %992 = vset.pattern.permute.xlu0 0
        %993 = vperm.xlu0 %992, %v963
        %v994 = vpop.permute.xlu0 %993
        %997 = vset.pattern.permute.xlu0 0
        %998 = vperm.xlu0 %997, %v964
        %v999 = vpop.permute.xlu0 %998
        %1002 = vset.pattern.permute.xlu0 0
        %1003 = vperm.xlu0 %1002, %v965
        %v1004 = vpop.permute.xlu0 %1003
        %1007 = vset.pattern.permute.xlu0 0
        %1008 = vperm.xlu0 %1007, %v966
        %v1009 = vpop.permute.xlu0 %1008
        %1012 = vset.pattern.permute.xlu0 0
        %1013 = vperm.xlu0 %1012, %v967
        %v1014 = vpop.permute.xlu0 %1013
        %1017 = vset.pattern.permute.xlu0 0
        %1018 = vperm.xlu0 %1017, %v968
        %v1019 = vpop.permute.xlu0 %1018
        %1022 = vset.pattern.permute.xlu0 0
        %1023 = vperm.xlu0 %1022, %v969
        %v1024 = vpop.permute.xlu0 %1023
        %1027 = vset.pattern.permute.xlu0 0
        %1028 = vperm.xlu0 %1027, %v970
        %v1029 = vpop.permute.xlu0 %1028
        %1032 = vset.pattern.permute.xlu0 0
        %1033 = vperm.xlu0 %1032, %v971
        %v1034 = vpop.permute.xlu0 %1033
        %1037 = vset.pattern.permute.xlu0 0
        %1038 = vperm.xlu0 %1037, %v972
        %v1039 = vpop.permute.xlu0 %1038
        %1042 = vset.pattern.permute.xlu0 0
        %1043 = vperm.xlu0 %1042, %v973
        %v1044 = vpop.permute.xlu0 %1043
        %1047 = vset.pattern.permute.xlu0 0
        %1048 = vperm.xlu0 %1047, %v974
        %v1049 = vpop.permute.xlu0 %1048
        %1052 = vset.pattern.permute.xlu0 0
        %1053 = vperm.xlu0 %1052, %v975
        %v1054 = vpop.permute.xlu0 %1053
        %v1056 = vadd.f32 %v649, %v979
        %v1057 = vadd.f32 %v651, %v979
        %v1058 = vadd.f32 %v722, %v979
        %v1059 = vadd.f32 %v653, %v984
        %v1060 = vadd.f32 %v655, %v984
        %v1061 = vadd.f32 %v725, %v984
        %v1062 = vadd.f32 %v659, %v989
        %v1063 = vadd.f32 %v661, %v989
        %v1064 = vadd.f32 %v730, %v989
        %v1065 = vadd.f32 %v663, %v994
        %v1066 = vadd.f32 %v665, %v994
        %v1067 = vadd.f32 %v733, %v994
        %v1068 = vadd.f32 %v669, %v999
        %v1069 = vadd.f32 %v671, %v999
        %v1070 = vadd.f32 %v738, %v999
        %v1071 = vadd.f32 %v673, %v1004
        %v1072 = vadd.f32 %v675, %v1004
        %v1073 = vadd.f32 %v741, %v1004
        %v1074 = vadd.f32 %v679, %v1009
        %v1075 = vadd.f32 %v681, %v1009
        %v1076 = vadd.f32 %v746, %v1009
        %v1077 = vadd.f32 %v683, %v1014
        %v1078 = vadd.f32 %v685, %v1014
        %v1079 = vadd.f32 %v749, %v1014
        %v1080 = vadd.f32 %v936, %v1019
        %v1081 = vadd.f32 %v937, %v1019
        %v1082 = vadd.f32 %v938, %v1019
        %v1083 = vadd.f32 %v939, %v1024
        %v1084 = vadd.f32 %v940, %v1024
        %v1085 = vadd.f32 %v941, %v1024
        %v1086 = vadd.f32 %v942, %v1029
        %v1087 = vadd.f32 %v943, %v1029
        %v1088 = vadd.f32 %v944, %v1029
        %v1089 = vadd.f32 %v945, %v1034
        %v1090 = vadd.f32 %v946, %v1034
        %v1091 = vadd.f32 %v947, %v1034
        %v1092 = vadd.f32 %v948, %v1039
        %v1093 = vadd.f32 %v949, %v1039
        %v1094 = vadd.f32 %v950, %v1039
        %v1095 = vadd.f32 %v951, %v1044
        %v1096 = vadd.f32 %v952, %v1044
        %v1097 = vadd.f32 %v953, %v1044
        %v1098 = vadd.f32 %v954, %v1049
        %v1099 = vadd.f32 %v955, %v1049
        %v1100 = vadd.f32 %v956, %v1049
        %v1101 = vadd.f32 %v957, %v1054
        %v1102 = vadd.f32 %v958, %v1054
        %v1103 = vadd.f32 %v959, %v1054
        %v1104 = vtanh.pop %v1056
        %v1105 = vtanh.pop %v1057
        %v1106 = vtanh.pop %v1058
        %v1107 = vtanh.pop %v1059
        %v1108 = vtanh.pop %v1060
        %v1109 = vtanh.pop %v1061
        %v1110 = vtanh.pop %v1062
        %v1111 = vtanh.pop %v1063
        %v1112 = vtanh.pop %v1064
        %v1113 = vtanh.pop %v1065
        %v1114 = vtanh.pop %v1066
        %v1115 = vtanh.pop %v1067
        %v1116 = vtanh.pop %v1068
        %v1117 = vtanh.pop %v1069
        %v1118 = vtanh.pop %v1070
        %v1119 = vtanh.pop %v1071
        %v1120 = vtanh.pop %v1072
        %v1121 = vtanh.pop %v1073
        %v1122 = vtanh.pop %v1074
        %v1123 = vtanh.pop %v1075
        %v1124 = vtanh.pop %v1076
        %v1125 = vtanh.pop %v1077
        %v1126 = vtanh.pop %v1078
        %v1127 = vtanh.pop %v1079
        %v1128 = vtanh.pop %v1080
        %v1129 = vtanh.pop %v1081
        %v1130 = vtanh.pop %v1082
        %v1131 = vtanh.pop %v1083
        %v1132 = vtanh.pop %v1084
        %v1133 = vtanh.pop %v1085
        %v1134 = vtanh.pop %v1086
        %v1135 = vtanh.pop %v1087
        %v1136 = vtanh.pop %v1088
        %v1137 = vtanh.pop %v1089
        %v1138 = vtanh.pop %v1090
        %v1139 = vtanh.pop %v1091
        %v1140 = vtanh.pop %v1092
        %v1141 = vtanh.pop %v1093
        %v1142 = vtanh.pop %v1094
        %v1143 = vtanh.pop %v1095
        %v1144 = vtanh.pop %v1096
        %v1145 = vtanh.pop %v1097
        %v1146 = vtanh.pop %v1098
        %v1147 = vtanh.pop %v1099
        %v1148 = vtanh.pop %v1100
        %v1149 = vtanh.pop %v1101
        %v1150 = vtanh.pop %v1102
        %v1151 = vtanh.pop %v1103
        %v1152 = vld [vmem:[%s5] sm:$0xf]
        %v1153 = vld [vmem:[%s5 + $0x4] sm:$0xf]
        %v1154 = vld [vmem:[%s5 + $0x8] sm:$0xf]
        %v1155 = vld [vmem:[%s5 + $0xc] sm:$0xf]
        %v1156 = vld [vmem:[%s5 + $0x10] sm:$0xf]
        %v1157 = vld [vmem:[%s5 + $0x14] sm:$0xf]
        %v1158 = vld [vmem:[%s5 + $0x18] sm:$0xf]
        %v1159 = vld [vmem:[%s5 + $0x1c] sm:$0xf]
        %v1160 = vld [vmem:[%s5 + $0x20] sm:$0xf]
        %v1161 = vld [vmem:[%s5 + $0x24] sm:$0xf]
        %v1162 = vld [vmem:[%s5 + $0x28] sm:$0xf]
        %v1163 = vld [vmem:[%s5 + $0x2c] sm:$0xf]
        %v1164 = vld [vmem:[%s5 + $0x30] sm:$0xf]
        %v1165 = vld [vmem:[%s5 + $0x34] sm:$0xf]
        %v1166 = vld [vmem:[%s5 + $0x38] sm:$0xf]
        %v1167 = vld [vmem:[%s5 + $0x3c] sm:$0xf]
        %v1168 = vpack.c.bf16 %v1107, %v1104
        %v1169 = vpack.c.bf16 %v1108, %v1105
        %v1170 = vpack.c.bf16 %v1109, %v1106
        %v1171 = vpack.c.bf16 %v1113, %v1110
        %v1172 = vpack.c.bf16 %v1114, %v1111
        %v1173 = vpack.c.bf16 %v1115, %v1112
        %v1174 = vpack.c.bf16 %v1119, %v1116
        %v1175 = vpack.c.bf16 %v1120, %v1117
        %v1176 = vpack.c.bf16 %v1121, %v1118
        %v1177 = vpack.c.bf16 %v1125, %v1122
        %v1178 = vpack.c.bf16 %v1126, %v1123
        %v1179 = vpack.c.bf16 %v1127, %v1124
        %v1180 = vpack.c.bf16 %v1131, %v1128
        %v1181 = vpack.c.bf16 %v1132, %v1129
        %v1182 = vpack.c.bf16 %v1133, %v1130
        %v1183 = vpack.c.bf16 %v1137, %v1134
        %v1184 = vpack.c.bf16 %v1138, %v1135
        %v1185 = vpack.c.bf16 %v1139, %v1136
        %v1186 = vpack.c.bf16 %v1143, %v1140
        %v1187 = vpack.c.bf16 %v1144, %v1141
        %v1188 = vpack.c.bf16 %v1145, %v1142
        %v1189 = vpack.c.bf16 %v1149, %v1146
        %v1190 = vpack.c.bf16 %v1150, %v1147
        %v1191 = vpack.c.bf16 %v1151, %v1148
        %v1192 = vld [vmem:[%s6] sm:$0xff]
        %v1193 = vld [vmem:[%s6 + $0x8] sm:$0xff]
        %v1194 = vld [vmem:[%s6 + $0x10] sm:$0xff]
        %v1195 = vld [vmem:[%s6 + $0x18] sm:$0xff]
        %v1196 = vld [vmem:[%s6 + $0x20] sm:$0xff]
        %v1197 = vld [vmem:[%s6 + $0x28] sm:$0xff]
        %v1198 = vld [vmem:[%s6 + $0x30] sm:$0xff]
        %v1199 = vld [vmem:[%s6 + $0x38] sm:$0xff]
        %v1200 = vld [vmem:[%s6 + $0x40] sm:$0xff]
        %v1201 = vld [vmem:[%s6 + $0x48] sm:$0xff]
        %v1202 = vld [vmem:[%s6 + $0x50] sm:$0xff]
        %v1203 = vld [vmem:[%s6 + $0x58] sm:$0xff]
        %v1204 = vld [vmem:[%s6 + $0x60] sm:$0xff]
        %v1205 = vld [vmem:[%s6 + $0x68] sm:$0xff]
        %v1206 = vld [vmem:[%s6 + $0x70] sm:$0xff]
        %v1207 = vld [vmem:[%s6 + $0x78] sm:$0xff]
        %1209 = vset.pattern.permute.xlu0 0
        %1210 = vperm.xlu0 %1209, %v1192
        %v1211 = vpop.permute.xlu0 %1210
        %1214 = vset.pattern.permute.xlu0 0
        %1215 = vperm.xlu0 %1214, %v1193
        %v1216 = vpop.permute.xlu0 %1215
        %1219 = vset.pattern.permute.xlu0 0
        %1220 = vperm.xlu0 %1219, %v1194
        %v1221 = vpop.permute.xlu0 %1220
        %1224 = vset.pattern.permute.xlu0 0
        %1225 = vperm.xlu0 %1224, %v1195
        %v1226 = vpop.permute.xlu0 %1225
        %1229 = vset.pattern.permute.xlu0 0
        %1230 = vperm.xlu0 %1229, %v1196
        %v1231 = vpop.permute.xlu0 %1230
        %1234 = vset.pattern.permute.xlu0 0
        %1235 = vperm.xlu0 %1234, %v1197
        %v1236 = vpop.permute.xlu0 %1235
        %1239 = vset.pattern.permute.xlu0 0
        %1240 = vperm.xlu0 %1239, %v1198
        %v1241 = vpop.permute.xlu0 %1240
        %1244 = vset.pattern.permute.xlu0 0
        %1245 = vperm.xlu0 %1244, %v1199
        %v1246 = vpop.permute.xlu0 %1245
        %1249 = vset.pattern.permute.xlu0 0
        %1250 = vperm.xlu0 %1249, %v1200
        %v1251 = vpop.permute.xlu0 %1250
        %1254 = vset.pattern.permute.xlu0 0
        %1255 = vperm.xlu0 %1254, %v1201
        %v1256 = vpop.permute.xlu0 %1255
        %1259 = vset.pattern.permute.xlu0 0
        %1260 = vperm.xlu0 %1259, %v1202
        %v1261 = vpop.permute.xlu0 %1260
        %1264 = vset.pattern.permute.xlu0 0
        %1265 = vperm.xlu0 %1264, %v1203
        %v1266 = vpop.permute.xlu0 %1265
        %1269 = vset.pattern.permute.xlu0 0
        %1270 = vperm.xlu0 %1269, %v1204
        %v1271 = vpop.permute.xlu0 %1270
        %1274 = vset.pattern.permute.xlu0 0
        %1275 = vperm.xlu0 %1274, %v1205
        %v1276 = vpop.permute.xlu0 %1275
        %1279 = vset.pattern.permute.xlu0 0
        %1280 = vperm.xlu0 %1279, %v1206
        %v1281 = vpop.permute.xlu0 %1280
        %1284 = vset.pattern.permute.xlu0 0
        %1285 = vperm.xlu0 %1284, %v1207
        %v1286 = vpop.permute.xlu0 %1285
        %v1304 = vunpack.c.l.b16 %v1152
        %v1305 = vunpack.c.l.b16 %v1153
        %v1306 = vunpack.c.l.b16 %v1154
        %v1307 = vunpack.c.l.b16 %v1155
        %v1308 = vunpack.c.l.b16 %v1156
        %v1309 = vunpack.c.l.b16 %v1157
        %v1310 = vunpack.c.l.b16 %v1158
        %v1311 = vunpack.c.l.b16 %v1159
        %v1312 = vunpack.c.l.b16 %v1160
        %v1313 = vunpack.c.l.b16 %v1161
        %v1314 = vunpack.c.l.b16 %v1162
        %v1315 = vunpack.c.l.b16 %v1163
        %v1316 = vunpack.c.l.b16 %v1164
        %v1317 = vunpack.c.l.b16 %v1165
        %v1318 = vunpack.c.l.b16 %v1166
        %v1319 = vunpack.c.l.b16 %v1167
        %v1320 = vpack.c.b16 %v1305, %v1304
        %v1321 = vpack.c.b16 %v1307, %v1306
        %v1322 = vpack.c.b16 %v1309, %v1308
        %v1323 = vpack.c.b16 %v1311, %v1310
        %v1324 = vpack.c.b16 %v1313, %v1312
        %v1325 = vpack.c.b16 %v1315, %v1314
        %v1326 = vpack.c.b16 %v1317, %v1316
        %v1327 = vpack.c.b16 %v1319, %v1318
        %1336 = vmatprep.subr.bf16.mxu0 %v1169
        %1337 = vmatpush1.bf16.msra.mxu0 %v1168
        %1338 = vmatprep.subr.bf16.mxu0 %v1172
        %1339 = vmatpush1.bf16.msra.mxu0 %v1171
        %1340 = vmatprep.subr.bf16.mxu0 %v1175
        %1341 = vmatpush1.bf16.msra.mxu0 %v1174
        %1342 = vmatprep.subr.bf16.mxu0 %v1178
        %1343 = vmatpush1.bf16.msra.mxu0 %v1177
        %1344 = vmatprep.subr.bf16.mxu0 %v1181
        %1345 = vmatpush1.bf16.msra.mxu0 %v1180
        %1346 = vmatprep.subr.bf16.mxu0 %v1184
        %1347 = vmatpush1.bf16.msra.mxu0 %v1183
        %1348 = vmatprep.subr.bf16.mxu0 %v1187
        %1349 = vmatpush1.bf16.msra.mxu0 %v1186
        %1350 = vmatprep.subr.bf16.mxu0 %v1190
        %1351 = vmatpush1.bf16.msra.mxu0 %v1189
        %1352 = vmatprep.subr.bf16.mxu0 0
        %1353 = vmatpush1.bf16.msra.mxu0 0
        %1354 = vmatprep.subr.bf16.mxu0 0
        %1355 = vmatpush1.bf16.msra.mxu0 0
        %1356 = vmatprep.subr.bf16.mxu0 0
        %1357 = vmatpush1.bf16.msra.mxu0 0
        %1358 = vmatprep.subr.bf16.mxu0 0
        %1359 = vmatpush1.bf16.msra.mxu0 0
        %1360 = vmatprep.subr.bf16.mxu0 0
        %1361 = vmatpush1.bf16.msra.mxu0 0
        %1362 = vmatprep.subr.bf16.mxu0 0
        %1363 = vmatpush1.bf16.msra.mxu0 0
        %1364 = vmatprep.subr.bf16.mxu0 0
        %1365 = vmatpush1.bf16.msra.mxu0 0
        %1366 = vmatprep.subr.bf16.mxu0 0
        %1367 = vmatpush1.bf16.msra.mxu0 0
        %1368 = vmatprep.mubr.bf16.mxu0 0
        %1369 = vmatmul.mubr.bf16.gmra.mrb[0].mxu0 %v1320
        %v1370 = vpop.f32.mrb[0].mxu0
        %v1371 = vadd.f32 %v1211, %v1370
        %v1372 = vpop.f32.mrb[0].mxu0
        %v1373 = vadd.f32 %v1211, %v1372
        %v1374 = vpop.f32.mrb[0].mxu0
        %v1375 = vadd.f32 %v1216, %v1374
        %v1376 = vpop.f32.mrb[0].mxu0
        %v1377 = vadd.f32 %v1216, %v1376
        %1378 = vmatprep.mubr.bf16.mxu0 0
        %1379 = vmatmul.mubr.bf16.gmra.mrb[0].mxu0 %v1321
        %v1380 = vpop.f32.mrb[0].mxu0
        %v1381 = vadd.f32 %v1221, %v1380
        %v1382 = vpop.f32.mrb[0].mxu0
        %v1383 = vadd.f32 %v1221, %v1382
        %v1384 = vpop.f32.mrb[0].mxu0
        %v1385 = vadd.f32 %v1226, %v1384
        %v1386 = vpop.f32.mrb[0].mxu0
        %v1387 = vadd.f32 %v1226, %v1386
        %1388 = vmatprep.mubr.bf16.mxu0 0
        %1389 = vmatmul.mubr.bf16.gmra.mrb[0].mxu0 %v1322
        %v1390 = vpop.f32.mrb[0].mxu0
        %v1391 = vadd.f32 %v1231, %v1390
        %v1392 = vpop.f32.mrb[0].mxu0
        %v1393 = vadd.f32 %v1231, %v1392
        %v1394 = vpop.f32.mrb[0].mxu0
        %v1395 = vadd.f32 %v1236, %v1394
        %v1396 = vpop.f32.mrb[0].mxu0
        %v1397 = vadd.f32 %v1236, %v1396
        %1398 = vmatprep.mubr.bf16.mxu0 0
        %1399 = vmatmul.mubr.bf16.gmra.mrb[0].mxu0 %v1323
        %v1400 = vpop.f32.mrb[0].mxu0
        %v1401 = vadd.f32 %v1241, %v1400
        %v1402 = vpop.f32.mrb[0].mxu0
        %v1403 = vadd.f32 %v1241, %v1402
        %v1404 = vpop.f32.mrb[0].mxu0
        %v1405 = vadd.f32 %v1246, %v1404
        %v1406 = vpop.f32.mrb[0].mxu0
        %v1407 = vadd.f32 %v1246, %v1406
        %1408 = vmatprep.mubr.bf16.mxu0 0
        %1409 = vmatmul.mubr.bf16.gmra.mrb[0].mxu0 %v1324
        %v1410 = vpop.f32.mrb[0].mxu0
        %v1411 = vadd.f32 %v1251, %v1410
        %v1412 = vpop.f32.mrb[0].mxu0
        %v1413 = vadd.f32 %v1251, %v1412
        %v1414 = vpop.f32.mrb[0].mxu0
        %v1415 = vadd.f32 %v1256, %v1414
        %v1416 = vpop.f32.mrb[0].mxu0
        %v1417 = vadd.f32 %v1256, %v1416
        %1418 = vmatprep.mubr.bf16.mxu0 0
        %1419 = vmatmul.mubr.bf16.gmra.mrb[0].mxu0 %v1325
        %v1420 = vpop.f32.mrb[0].mxu0
        %v1421 = vadd.f32 %v1261, %v1420
        %v1422 = vpop.f32.mrb[0].mxu0
        %v1423 = vadd.f32 %v1261, %v1422
        %v1424 = vpop.f32.mrb[0].mxu0
        %v1425 = vadd.f32 %v1266, %v1424
        %v1426 = vpop.f32.mrb[0].mxu0
        %v1427 = vadd.f32 %v1266, %v1426
        %1428 = vmatprep.mubr.bf16.mxu0 0
        %1429 = vmatmul.mubr.bf16.gmra.mrb[0].mxu0 %v1326
        %v1430 = vpop.f32.mrb[0].mxu0
        %v1431 = vadd.f32 %v1271, %v1430
        %v1432 = vpop.f32.mrb[0].mxu0
        %v1433 = vadd.f32 %v1271, %v1432
        %v1434 = vpop.f32.mrb[0].mxu0
        %v1435 = vadd.f32 %v1276, %v1434
        %v1436 = vpop.f32.mrb[0].mxu0
        %v1437 = vadd.f32 %v1276, %v1436
        %1438 = vmatprep.mubr.bf16.mxu0 0
        %1439 = vmatmul.mubr.bf16.gmra.mrb[0].mxu0 %v1327
        %v1440 = vpop.f32.mrb[0].mxu0
        %v1441 = vadd.f32 %v1281, %v1440
        %v1442 = vpop.f32.mrb[0].mxu0
        %v1443 = vadd.f32 %v1281, %v1442
        %v1444 = vpop.f32.mrb[0].mxu0
        %v1445 = vadd.f32 %v1286, %v1444
        %v1446 = vpop.f32.mrb[0].mxu0
        %v1447 = vadd.f32 %v1286, %v1446
        %1448 = vdwg.mxu0
        %1449 = vmatprep.subr.bf16.mxu0 0
        %1450 = vmatpush1.bf16.msra.mxu0 %v1170
        %1451 = vmatprep.subr.bf16.mxu0 0
        %1452 = vmatpush1.bf16.msra.mxu0 %v1173
        %1453 = vmatprep.subr.bf16.mxu0 0
        %1454 = vmatpush1.bf16.msra.mxu0 %v1176
        %1455 = vmatprep.subr.bf16.mxu0 0
        %1456 = vmatpush1.bf16.msra.mxu0 %v1179
        %1457 = vmatprep.subr.bf16.mxu0 0
        %1458 = vmatpush1.bf16.msra.mxu0 %v1182
        %1459 = vmatprep.subr.bf16.mxu0 0
        %1460 = vmatpush1.bf16.msra.mxu0 %v1185
        %1461 = vmatprep.subr.bf16.mxu0 0
        %1462 = vmatpush1.bf16.msra.mxu0 %v1188
        %1463 = vmatprep.subr.bf16.mxu0 0
        %1464 = vmatpush1.bf16.msra.mxu0 %v1191
        %1465 = vmatprep.subr.bf16.mxu0 0
        %1466 = vmatpush1.bf16.msra.mxu0 0
        %1467 = vmatprep.subr.bf16.mxu0 0
        %1468 = vmatpush1.bf16.msra.mxu0 0
        %1469 = vmatprep.subr.bf16.mxu0 0
        %1470 = vmatpush1.bf16.msra.mxu0 0
        %1471 = vmatprep.subr.bf16.mxu0 0
        %1472 = vmatpush1.bf16.msra.mxu0 0
        %1473 = vmatprep.subr.bf16.mxu0 0
        %1474 = vmatpush1.bf16.msra.mxu0 0
        %1475 = vmatprep.subr.bf16.mxu0 0
        %1476 = vmatpush1.bf16.msra.mxu0 0
        %1477 = vmatprep.subr.bf16.mxu0 0
        %1478 = vmatpush1.bf16.msra.mxu0 0
        %1479 = vmatprep.subr.bf16.mxu0 0
        %1480 = vmatpush1.bf16.msra.mxu0 0
        %1481 = vmatprep.mubr.bf16.mxu0 0
        %1482 = vmatmul.mubr.bf16.gmra.mrb[0].mxu0 %v1320
        %v1483 = vpop.f32.mrb[0].mxu0
        %v1484 = vadd.f32 %v1211, %v1483
        %v1485 = vpop.f32.mrb[0].mxu0
        %v1486 = vpop.f32.mrb[0].mxu0
        %v1487 = vadd.f32 %v1216, %v1486
        %v1488 = vpop.f32.mrb[0].mxu0
        %1489 = vmatprep.mubr.bf16.mxu0 0
        %1490 = vmatmul.mubr.bf16.gmra.mrb[0].mxu0 %v1321
        %v1491 = vpop.f32.mrb[0].mxu0
        %v1492 = vadd.f32 %v1221, %v1491
        %v1493 = vpop.f32.mrb[0].mxu0
        %v1494 = vpop.f32.mrb[0].mxu0
        %v1495 = vadd.f32 %v1226, %v1494
        %v1496 = vpop.f32.mrb[0].mxu0
        %1497 = vmatprep.mubr.bf16.mxu0 0
        %1498 = vmatmul.mubr.bf16.gmra.mrb[0].mxu0 %v1322
        %v1499 = vpop.f32.mrb[0].mxu0
        %v1500 = vadd.f32 %v1231, %v1499
        %v1501 = vpop.f32.mrb[0].mxu0
        %v1502 = vpop.f32.mrb[0].mxu0
        %v1503 = vadd.f32 %v1236, %v1502
        %v1504 = vpop.f32.mrb[0].mxu0
        %1505 = vmatprep.mubr.bf16.mxu0 0
        %1506 = vmatmul.mubr.bf16.gmra.mrb[0].mxu0 %v1323
        %v1507 = vpop.f32.mrb[0].mxu0
        %v1508 = vadd.f32 %v1241, %v1507
        %v1509 = vpop.f32.mrb[0].mxu0
        %v1510 = vpop.f32.mrb[0].mxu0
        %v1511 = vadd.f32 %v1246, %v1510
        %v1512 = vpop.f32.mrb[0].mxu0
        %1513 = vmatprep.mubr.bf16.mxu0 0
        %1514 = vmatmul.mubr.bf16.gmra.mrb[0].mxu0 %v1324
        %v1515 = vpop.f32.mrb[0].mxu0
        %v1516 = vadd.f32 %v1251, %v1515
        %v1517 = vpop.f32.mrb[0].mxu0
        %v1518 = vpop.f32.mrb[0].mxu0
        %v1519 = vadd.f32 %v1256, %v1518
        %v1520 = vpop.f32.mrb[0].mxu0
        %1521 = vmatprep.mubr.bf16.mxu0 0
        %1522 = vmatmul.mubr.bf16.gmra.mrb[0].mxu0 %v1325
        %v1523 = vpop.f32.mrb[0].mxu0
        %v1524 = vadd.f32 %v1261, %v1523
        %v1525 = vpop.f32.mrb[0].mxu0
        %v1526 = vpop.f32.mrb[0].mxu0
        %v1527 = vadd.f32 %v1266, %v1526
        %v1528 = vpop.f32.mrb[0].mxu0
        %1529 = vmatprep.mubr.bf16.mxu0 0
        %1530 = vmatmul.mubr.bf16.gmra.mrb[0].mxu0 %v1326
        %v1531 = vpop.f32.mrb[0].mxu0
        %v1532 = vadd.f32 %v1271, %v1531
        %v1533 = vpop.f32.mrb[0].mxu0
        %v1534 = vpop.f32.mrb[0].mxu0
        %v1535 = vadd.f32 %v1276, %v1534
        %v1536 = vpop.f32.mrb[0].mxu0
        %1537 = vmatprep.mubr.bf16.mxu0 0
        %1538 = vmatmul.mubr.bf16.gmra.mrb[0].mxu0 %v1327
        %v1539 = vpop.f32.mrb[0].mxu0
        %v1540 = vadd.f32 %v1281, %v1539
        %v1541 = vpop.f32.mrb[0].mxu0
        %v1542 = vpop.f32.mrb[0].mxu0
        %v1543 = vadd.f32 %v1286, %v1542
        %v1544 = vpop.f32.mrb[0].mxu0
        %1545 = vdwg.mxu0
        %v1546 = vtanh.pop %v1371
        %v1547 = vtanh.pop %v1373
        %v1548 = vtanh.pop %v1484
        %v1549 = vtanh.pop %v1375
        %v1550 = vtanh.pop %v1377
        %v1551 = vtanh.pop %v1487
        %v1552 = vtanh.pop %v1381
        %v1553 = vtanh.pop %v1383
        %v1554 = vtanh.pop %v1492
        %v1555 = vtanh.pop %v1385
        %v1556 = vtanh.pop %v1387
        %v1557 = vtanh.pop %v1495
        %v1558 = vtanh.pop %v1391
        %v1559 = vtanh.pop %v1393
        %v1560 = vtanh.pop %v1500
        %v1561 = vtanh.pop %v1395
        %v1562 = vtanh.pop %v1397
        %v1563 = vtanh.pop %v1503
        %v1564 = vtanh.pop %v1401
        %v1565 = vtanh.pop %v1403
        %v1566 = vtanh.pop %v1508
        %v1567 = vtanh.pop %v1405
        %v1568 = vtanh.pop %v1407
        %v1569 = vtanh.pop %v1511
        %v1570 = vtanh.pop %v1411
        %v1571 = vtanh.pop %v1413
        %v1572 = vtanh.pop %v1516
        %v1573 = vtanh.pop %v1415
        %v1574 = vtanh.pop %v1417
        %v1575 = vtanh.pop %v1519
        %v1576 = vtanh.pop %v1421
        %v1577 = vtanh.pop %v1423
        %v1578 = vtanh.pop %v1524
        %v1579 = vtanh.pop %v1425
        %v1580 = vtanh.pop %v1427
        %v1581 = vtanh.pop %v1527
        %v1582 = vtanh.pop %v1431
        %v1583 = vtanh.pop %v1433
        %v1584 = vtanh.pop %v1532
        %v1585 = vtanh.pop %v1435
        %v1586 = vtanh.pop %v1437
        %v1587 = vtanh.pop %v1535
        %v1588 = vtanh.pop %v1441
        %v1589 = vtanh.pop %v1443
        %v1590 = vtanh.pop %v1540
        %v1591 = vtanh.pop %v1445
        %v1592 = vtanh.pop %v1447
        %v1593 = vtanh.pop %v1543
        %v1594 = vld [vmem:[%s7] sm:$0xf]
        %v1595 = vld [vmem:[%s7 + $0x4] sm:$0xf]
        %v1596 = vld [vmem:[%s7 + $0x8] sm:$0xf]
        %v1597 = vld [vmem:[%s7 + $0xc] sm:$0xf]
        %v1598 = vld [vmem:[%s7 + $0x10] sm:$0xf]
        %v1599 = vld [vmem:[%s7 + $0x14] sm:$0xf]
        %v1600 = vld [vmem:[%s7 + $0x18] sm:$0xf]
        %v1601 = vld [vmem:[%s7 + $0x1c] sm:$0xf]
        %v1602 = vld [vmem:[%s7 + $0x20] sm:$0xf]
        %v1603 = vld [vmem:[%s7 + $0x24] sm:$0xf]
        %v1604 = vld [vmem:[%s7 + $0x28] sm:$0xf]
        %v1605 = vld [vmem:[%s7 + $0x2c] sm:$0xf]
        %v1606 = vld [vmem:[%s7 + $0x30] sm:$0xf]
        %v1607 = vld [vmem:[%s7 + $0x34] sm:$0xf]
        %v1608 = vld [vmem:[%s7 + $0x38] sm:$0xf]
        %v1609 = vld [vmem:[%s7 + $0x3c] sm:$0xf]
        %v1610 = vpack.c.bf16 %v1549, %v1546
        %v1611 = vpack.c.bf16 %v1550, %v1547
        %v1612 = vpack.c.bf16 %v1551, %v1548
        %v1613 = vpack.c.bf16 %v1555, %v1552
        %v1614 = vpack.c.bf16 %v1556, %v1553
        %v1615 = vpack.c.bf16 %v1557, %v1554
        %v1616 = vpack.c.bf16 %v1561, %v1558
        %v1617 = vpack.c.bf16 %v1562, %v1559
        %v1618 = vpack.c.bf16 %v1563, %v1560
        %v1619 = vpack.c.bf16 %v1567, %v1564
        %v1620 = vpack.c.bf16 %v1568, %v1565
        %v1621 = vpack.c.bf16 %v1569, %v1566
        %v1622 = vpack.c.bf16 %v1573, %v1570
        %v1623 = vpack.c.bf16 %v1574, %v1571
        %v1624 = vpack.c.bf16 %v1575, %v1572
        %v1625 = vpack.c.bf16 %v1579, %v1576
        %v1626 = vpack.c.bf16 %v1580, %v1577
        %v1627 = vpack.c.bf16 %v1581, %v1578
        %v1628 = vpack.c.bf16 %v1585, %v1582
        %v1629 = vpack.c.bf16 %v1586, %v1583
        %v1630 = vpack.c.bf16 %v1587, %v1584
        %v1631 = vpack.c.bf16 %v1591, %v1588
        %v1632 = vpack.c.bf16 %v1592, %v1589
        %v1633 = vpack.c.bf16 %v1593, %v1590
        %v1634 = vld [vmem:[%s8] sm:$0xff]
        %v1635 = vld [vmem:[%s8 + $0x8] sm:$0xff]
        %v1636 = vld [vmem:[%s8 + $0x10] sm:$0xff]
        %v1637 = vld [vmem:[%s8 + $0x18] sm:$0xff]
        %v1638 = vld [vmem:[%s8 + $0x20] sm:$0xff]
        %v1639 = vld [vmem:[%s8 + $0x28] sm:$0xff]
        %v1640 = vld [vmem:[%s8 + $0x30] sm:$0xff]
        %v1641 = vld [vmem:[%s8 + $0x38] sm:$0xff]
        %v1642 = vld [vmem:[%s8 + $0x40] sm:$0xff]
        %v1643 = vld [vmem:[%s8 + $0x48] sm:$0xff]
        %v1644 = vld [vmem:[%s8 + $0x50] sm:$0xff]
        %v1645 = vld [vmem:[%s8 + $0x58] sm:$0xff]
        %v1646 = vld [vmem:[%s8 + $0x60] sm:$0xff]
        %v1647 = vld [vmem:[%s8 + $0x68] sm:$0xff]
        %v1648 = vld [vmem:[%s8 + $0x70] sm:$0xff]
        %v1649 = vld [vmem:[%s8 + $0x78] sm:$0xff]
        %1651 = vset.pattern.permute.xlu0 0
        %1652 = vperm.xlu0 %1651, %v1634
        %v1653 = vpop.permute.xlu0 %1652
        %1656 = vset.pattern.permute.xlu0 0
        %1657 = vperm.xlu0 %1656, %v1635
        %v1658 = vpop.permute.xlu0 %1657
        %1661 = vset.pattern.permute.xlu0 0
        %1662 = vperm.xlu0 %1661, %v1636
        %v1663 = vpop.permute.xlu0 %1662
        %1666 = vset.pattern.permute.xlu0 0
        %1667 = vperm.xlu0 %1666, %v1637
        %v1668 = vpop.permute.xlu0 %1667
        %1671 = vset.pattern.permute.xlu0 0
        %1672 = vperm.xlu0 %1671, %v1638
        %v1673 = vpop.permute.xlu0 %1672
        %1676 = vset.pattern.permute.xlu0 0
        %1677 = vperm.xlu0 %1676, %v1639
        %v1678 = vpop.permute.xlu0 %1677
        %1681 = vset.pattern.permute.xlu0 0
        %1682 = vperm.xlu0 %1681, %v1640
        %v1683 = vpop.permute.xlu0 %1682
        %1686 = vset.pattern.permute.xlu0 0
        %1687 = vperm.xlu0 %1686, %v1641
        %v1688 = vpop.permute.xlu0 %1687
        %1691 = vset.pattern.permute.xlu0 0
        %1692 = vperm.xlu0 %1691, %v1642
        %v1693 = vpop.permute.xlu0 %1692
        %1696 = vset.pattern.permute.xlu0 0
        %1697 = vperm.xlu0 %1696, %v1643
        %v1698 = vpop.permute.xlu0 %1697
        %1701 = vset.pattern.permute.xlu0 0
        %1702 = vperm.xlu0 %1701, %v1644
        %v1703 = vpop.permute.xlu0 %1702
        %1706 = vset.pattern.permute.xlu0 0
        %1707 = vperm.xlu0 %1706, %v1645
        %v1708 = vpop.permute.xlu0 %1707
        %1711 = vset.pattern.permute.xlu0 0
        %1712 = vperm.xlu0 %1711, %v1646
        %v1713 = vpop.permute.xlu0 %1712
        %1716 = vset.pattern.permute.xlu0 0
        %1717 = vperm.xlu0 %1716, %v1647
        %v1718 = vpop.permute.xlu0 %1717
        %1721 = vset.pattern.permute.xlu0 0
        %1722 = vperm.xlu0 %1721, %v1648
        %v1723 = vpop.permute.xlu0 %1722
        %1726 = vset.pattern.permute.xlu0 0
        %1727 = vperm.xlu0 %1726, %v1649
        %v1728 = vpop.permute.xlu0 %1727
        %v1746 = vunpack.c.l.b16 %v1594
        %v1747 = vunpack.c.l.b16 %v1595
        %v1748 = vunpack.c.l.b16 %v1596
        %v1749 = vunpack.c.l.b16 %v1597
        %v1750 = vunpack.c.l.b16 %v1598
        %v1751 = vunpack.c.l.b16 %v1599
        %v1752 = vunpack.c.l.b16 %v1600
        %v1753 = vunpack.c.l.b16 %v1601
        %v1754 = vunpack.c.l.b16 %v1602
        %v1755 = vunpack.c.l.b16 %v1603
        %v1756 = vunpack.c.l.b16 %v1604
        %v1757 = vunpack.c.l.b16 %v1605
        %v1758 = vunpack.c.l.b16 %v1606
        %v1759 = vunpack.c.l.b16 %v1607
        %v1760 = vunpack.c.l.b16 %v1608
        %v1761 = vunpack.c.l.b16 %v1609
        %v1762 = vpack.c.b16 %v1747, %v1746
        %v1763 = vpack.c.b16 %v1749, %v1748
        %v1764 = vpack.c.b16 %v1751, %v1750
        %v1765 = vpack.c.b16 %v1753, %v1752
        %v1766 = vpack.c.b16 %v1755, %v1754
        %v1767 = vpack.c.b16 %v1757, %v1756
        %v1768 = vpack.c.b16 %v1759, %v1758
        %v1769 = vpack.c.b16 %v1761, %v1760
        %1778 = vmatprep.subr.bf16.mxu0 %v1611
        %1779 = vmatpush1.bf16.msra.mxu0 %v1610
        %1780 = vmatprep.subr.bf16.mxu0 %v1614
        %1781 = vmatpush1.bf16.msra.mxu0 %v1613
        %1782 = vmatprep.subr.bf16.mxu0 %v1617
        %1783 = vmatpush1.bf16.msra.mxu0 %v1616
        %1784 = vmatprep.subr.bf16.mxu0 %v1620
        %1785 = vmatpush1.bf16.msra.mxu0 %v1619
        %1786 = vmatprep.subr.bf16.mxu0 %v1623
        %1787 = vmatpush1.bf16.msra.mxu0 %v1622
        %1788 = vmatprep.subr.bf16.mxu0 %v1626
        %1789 = vmatpush1.bf16.msra.mxu0 %v1625
        %1790 = vmatprep.subr.bf16.mxu0 %v1629
        %1791 = vmatpush1.bf16.msra.mxu0 %v1628
        %1792 = vmatprep.subr.bf16.mxu0 %v1632
        %1793 = vmatpush1.bf16.msra.mxu0 %v1631
        %1794 = vmatprep.subr.bf16.mxu0 0
        %1795 = vmatpush1.bf16.msra.mxu0 0
        %1796 = vmatprep.subr.bf16.mxu0 0
        %1797 = vmatpush1.bf16.msra.mxu0 0
        %1798 = vmatprep.subr.bf16.mxu0 0
        %1799 = vmatpush1.bf16.msra.mxu0 0
        %1800 = vmatprep.subr.bf16.mxu0 0
        %1801 = vmatpush1.bf16.msra.mxu0 0
        %1802 = vmatprep.subr.bf16.mxu0 0
        %1803 = vmatpush1.bf16.msra.mxu0 0
        %1804 = vmatprep.subr.bf16.mxu0 0
        %1805 = vmatpush1.bf16.msra.mxu0 0
        %1806 = vmatprep.subr.bf16.mxu0 0
        %1807 = vmatpush1.bf16.msra.mxu0 0
        %1808 = vmatprep.subr.bf16.mxu0 0
        %1809 = vmatpush1.bf16.msra.mxu0 0
        %1810 = vmatprep.mubr.bf16.mxu0 0
        %1811 = vmatmul.mubr.bf16.gmra.mrb[0].mxu0 %v1762
        %v1812 = vpop.f32.mrb[0].mxu0
        %v1813 = vadd.f32 %v1653, %v1812
        %v1814 = vpop.f32.mrb[0].mxu0
        %v1815 = vadd.f32 %v1653, %v1814
        %v1816 = vpop.f32.mrb[0].mxu0
        %v1817 = vadd.f32 %v1658, %v1816
        %v1818 = vpop.f32.mrb[0].mxu0
        %v1819 = vadd.f32 %v1658, %v1818
        %1820 = vmatprep.mubr.bf16.mxu0 0
        %1821 = vmatmul.mubr.bf16.gmra.mrb[0].mxu0 %v1763
        %v1822 = vpop.f32.mrb[0].mxu0
        %v1823 = vadd.f32 %v1663, %v1822
        %v1824 = vpop.f32.mrb[0].mxu0
        %v1825 = vadd.f32 %v1663, %v1824
        %v1826 = vpop.f32.mrb[0].mxu0
        %v1827 = vadd.f32 %v1668, %v1826
        %v1828 = vpop.f32.mrb[0].mxu0
        %v1829 = vadd.f32 %v1668, %v1828
        %1830 = vmatprep.mubr.bf16.mxu0 0
        %1831 = vmatmul.mubr.bf16.gmra.mrb[0].mxu0 %v1764
        %v1832 = vpop.f32.mrb[0].mxu0
        %v1833 = vadd.f32 %v1673, %v1832
        %v1834 = vpop.f32.mrb[0].mxu0
        %v1835 = vadd.f32 %v1673, %v1834
        %v1836 = vpop.f32.mrb[0].mxu0
        %v1837 = vadd.f32 %v1678, %v1836
        %v1838 = vpop.f32.mrb[0].mxu0
        %v1839 = vadd.f32 %v1678, %v1838
        %1840 = vmatprep.mubr.bf16.mxu0 0
        %1841 = vmatmul.mubr.bf16.gmra.mrb[0].mxu0 %v1765
        %v1842 = vpop.f32.mrb[0].mxu0
        %v1843 = vadd.f32 %v1683, %v1842
        %v1844 = vpop.f32.mrb[0].mxu0
        %v1845 = vadd.f32 %v1683, %v1844
        %v1846 = vpop.f32.mrb[0].mxu0
        %v1847 = vadd.f32 %v1688, %v1846
        %v1848 = vpop.f32.mrb[0].mxu0
        %v1849 = vadd.f32 %v1688, %v1848
        %1850 = vmatprep.mubr.bf16.mxu0 0
        %1851 = vmatmul.mubr.bf16.gmra.mrb[0].mxu0 %v1766
        %v1852 = vpop.f32.mrb[0].mxu0
        %v1853 = vadd.f32 %v1693, %v1852
        %v1854 = vpop.f32.mrb[0].mxu0
        %v1855 = vadd.f32 %v1693, %v1854
        %v1856 = vpop.f32.mrb[0].mxu0
        %v1857 = vadd.f32 %v1698, %v1856
        %v1858 = vpop.f32.mrb[0].mxu0
        %v1859 = vadd.f32 %v1698, %v1858
        %1860 = vmatprep.mubr.bf16.mxu0 0
        %1861 = vmatmul.mubr.bf16.gmra.mrb[0].mxu0 %v1767
        %v1862 = vpop.f32.mrb[0].mxu0
        %v1863 = vadd.f32 %v1703, %v1862
        %v1864 = vpop.f32.mrb[0].mxu0
        %v1865 = vadd.f32 %v1703, %v1864
        %v1866 = vpop.f32.mrb[0].mxu0
        %v1867 = vadd.f32 %v1708, %v1866
        %v1868 = vpop.f32.mrb[0].mxu0
        %v1869 = vadd.f32 %v1708, %v1868
        %1870 = vmatprep.mubr.bf16.mxu0 0
        %1871 = vmatmul.mubr.bf16.gmra.mrb[0].mxu0 %v1768
        %v1872 = vpop.f32.mrb[0].mxu0
        %v1873 = vadd.f32 %v1713, %v1872
        %v1874 = vpop.f32.mrb[0].mxu0
        %v1875 = vadd.f32 %v1713, %v1874
        %v1876 = vpop.f32.mrb[0].mxu0
        %v1877 = vadd.f32 %v1718, %v1876
        %v1878 = vpop.f32.mrb[0].mxu0
        %v1879 = vadd.f32 %v1718, %v1878
        %1880 = vmatprep.mubr.bf16.mxu0 0
        %1881 = vmatmul.mubr.bf16.gmra.mrb[0].mxu0 %v1769
        %v1882 = vpop.f32.mrb[0].mxu0
        %v1883 = vadd.f32 %v1723, %v1882
        %v1884 = vpop.f32.mrb[0].mxu0
        %v1885 = vadd.f32 %v1723, %v1884
        %v1886 = vpop.f32.mrb[0].mxu0
        %v1887 = vadd.f32 %v1728, %v1886
        %v1888 = vpop.f32.mrb[0].mxu0
        %v1889 = vadd.f32 %v1728, %v1888
        %1890 = vdwg.mxu0
        %1891 = vmatprep.subr.bf16.mxu0 0
        %1892 = vmatpush1.bf16.msra.mxu0 %v1612
        %1893 = vmatprep.subr.bf16.mxu0 0
        %1894 = vmatpush1.bf16.msra.mxu0 %v1615
        %1895 = vmatprep.subr.bf16.mxu0 0
        %1896 = vmatpush1.bf16.msra.mxu0 %v1618
        %1897 = vmatprep.subr.bf16.mxu0 0
        %1898 = vmatpush1.bf16.msra.mxu0 %v1621
        %1899 = vmatprep.subr.bf16.mxu0 0
        %1900 = vmatpush1.bf16.msra.mxu0 %v1624
        %1901 = vmatprep.subr.bf16.mxu0 0
        %1902 = vmatpush1.bf16.msra.mxu0 %v1627
        %1903 = vmatprep.subr.bf16.mxu0 0
        %1904 = vmatpush1.bf16.msra.mxu0 %v1630
        %1905 = vmatprep.subr.bf16.mxu0 0
        %1906 = vmatpush1.bf16.msra.mxu0 %v1633
        %1907 = vmatprep.subr.bf16.mxu0 0
        %1908 = vmatpush1.bf16.msra.mxu0 0
        %1909 = vmatprep.subr.bf16.mxu0 0
        %1910 = vmatpush1.bf16.msra.mxu0 0
        %1911 = vmatprep.subr.bf16.mxu0 0
        %1912 = vmatpush1.bf16.msra.mxu0 0
        %1913 = vmatprep.subr.bf16.mxu0 0
        %1914 = vmatpush1.bf16.msra.mxu0 0
        %1915 = vmatprep.subr.bf16.mxu0 0
        %1916 = vmatpush1.bf16.msra.mxu0 0
        %1917 = vmatprep.subr.bf16.mxu0 0
        %1918 = vmatpush1.bf16.msra.mxu0 0
        %1919 = vmatprep.subr.bf16.mxu0 0
        %1920 = vmatpush1.bf16.msra.mxu0 0
        %1921 = vmatprep.subr.bf16.mxu0 0
        %1922 = vmatpush1.bf16.msra.mxu0 0
        %1923 = vmatprep.mubr.bf16.mxu0 0
        %1924 = vmatmul.mubr.bf16.gmra.mrb[0].mxu0 %v1762
        %v1925 = vpop.f32.mrb[0].mxu0
        %v1926 = vadd.f32 %v1653, %v1925
        %v1927 = vpop.f32.mrb[0].mxu0
        %v1928 = vpop.f32.mrb[0].mxu0
        %v1929 = vadd.f32 %v1658, %v1928
        %v1930 = vpop.f32.mrb[0].mxu0
        %1931 = vmatprep.mubr.bf16.mxu0 0
        %1932 = vmatmul.mubr.bf16.gmra.mrb[0].mxu0 %v1763
        %v1933 = vpop.f32.mrb[0].mxu0
        %v1934 = vadd.f32 %v1663, %v1933
        %v1935 = vpop.f32.mrb[0].mxu0
        %v1936 = vpop.f32.mrb[0].mxu0
        %v1937 = vadd.f32 %v1668, %v1936
        %v1938 = vpop.f32.mrb[0].mxu0
        %1939 = vmatprep.mubr.bf16.mxu0 0
        %1940 = vmatmul.mubr.bf16.gmra.mrb[0].mxu0 %v1764
        %v1941 = vpop.f32.mrb[0].mxu0
        %v1942 = vadd.f32 %v1673, %v1941
        %v1943 = vpop.f32.mrb[0].mxu0
        %v1944 = vpop.f32.mrb[0].mxu0
        %v1945 = vadd.f32 %v1678, %v1944
        %v1946 = vpop.f32.mrb[0].mxu0
        %1947 = vmatprep.mubr.bf16.mxu0 0
        %1948 = vmatmul.mubr.bf16.gmra.mrb[0].mxu0 %v1765
        %v1949 = vpop.f32.mrb[0].mxu0
        %v1950 = vadd.f32 %v1683, %v1949
        %v1951 = vpop.f32.mrb[0].mxu0
        %v1952 = vpop.f32.mrb[0].mxu0
        %v1953 = vadd.f32 %v1688, %v1952
        %v1954 = vpop.f32.mrb[0].mxu0
        %1955 = vmatprep.mubr.bf16.mxu0 0
        %1956 = vmatmul.mubr.bf16.gmra.mrb[0].mxu0 %v1766
        %v1957 = vpop.f32.mrb[0].mxu0
        %v1958 = vadd.f32 %v1693, %v1957
        %v1959 = vpop.f32.mrb[0].mxu0
        %v1960 = vpop.f32.mrb[0].mxu0
        %v1961 = vadd.f32 %v1698, %v1960
        %v1962 = vpop.f32.mrb[0].mxu0
        %1963 = vmatprep.mubr.bf16.mxu0 0
        %1964 = vmatmul.mubr.bf16.gmra.mrb[0].mxu0 %v1767
        %v1965 = vpop.f32.mrb[0].mxu0
        %v1966 = vadd.f32 %v1703, %v1965
        %v1967 = vpop.f32.mrb[0].mxu0
        %v1968 = vpop.f32.mrb[0].mxu0
        %v1969 = vadd.f32 %v1708, %v1968
        %v1970 = vpop.f32.mrb[0].mxu0
        %1971 = vmatprep.mubr.bf16.mxu0 0
        %1972 = vmatmul.mubr.bf16.gmra.mrb[0].mxu0 %v1768
        %v1973 = vpop.f32.mrb[0].mxu0
        %v1974 = vadd.f32 %v1713, %v1973
        %v1975 = vpop.f32.mrb[0].mxu0
        %v1976 = vpop.f32.mrb[0].mxu0
        %v1977 = vadd.f32 %v1718, %v1976
        %v1978 = vpop.f32.mrb[0].mxu0
        %1979 = vmatprep.mubr.bf16.mxu0 0
        %1980 = vmatmul.mubr.bf16.gmra.mrb[0].mxu0 %v1769
        %v1981 = vpop.f32.mrb[0].mxu0
        %v1982 = vadd.f32 %v1723, %v1981
        %v1983 = vpop.f32.mrb[0].mxu0
        %v1984 = vpop.f32.mrb[0].mxu0
        %v1985 = vadd.f32 %v1728, %v1984
        %v1986 = vpop.f32.mrb[0].mxu0
        %1987 = vdwg.mxu0
        %v1988 = vmul.f32 %v1813, %v1853
        %v1989 = vmul.f32 %v1815, %v1855
        %v1990 = vmul.f32 %v1926, %v1958
        %v1991 = vmul.f32 %v1817, %v1857
        %v1992 = vmul.f32 %v1819, %v1859
        %v1993 = vmul.f32 %v1929, %v1961
        %v1994 = vmul.f32 %v1823, %v1863
        %v1995 = vmul.f32 %v1825, %v1865
        %v1996 = vmul.f32 %v1934, %v1966
        %v1997 = vmul.f32 %v1827, %v1867
        %v1998 = vmul.f32 %v1829, %v1869
        %v1999 = vmul.f32 %v1937, %v1969
        %v2000 = vmul.f32 %v1833, %v1873
        %v2001 = vmul.f32 %v1835, %v1875
        %v2002 = vmul.f32 %v1942, %v1974
        %v2003 = vmul.f32 %v1837, %v1877
        %v2004 = vmul.f32 %v1839, %v1879
        %v2005 = vmul.f32 %v1945, %v1977
        %v2006 = vmul.f32 %v1843, %v1883
        %v2007 = vmul.f32 %v1845, %v1885
        %v2008 = vmul.f32 %v1950, %v1982
        %v2009 = vmul.f32 %v1847, %v1887
        %v2010 = vmul.f32 %v1849, %v1889
        %v2011 = vmul.f32 %v1953, %v1985
        %v2012 = vadd.f32 %v1988, %v1991
        %v2013 = vadd.f32 %v2012, %v1994
        %v2014 = vadd.f32 %v2013, %v1997
        %v2015 = vadd.f32 %v2014, %v2000
        %v2016 = vadd.f32 %v2015, %v2003
        %v2017 = vadd.f32 %v2016, %v2006
        %v2018 = vadd.f32 %v2017, %v2009
        %v2019 = vrot.slane %v2018, 4
        %v2020 = vadd.f32 %v2018, %v2019
        %v2021 = vrot.slane %v2020, 2
        %v2022 = vadd.f32 %v2020, %v2021
        %v2023 = vrot.slane %v2022, 1
        %v2024 = vadd.f32 %v2022, %v2023
        %v2025 = vadd.f32 %v1989, %v1992
        %v2026 = vadd.f32 %v2025, %v1995
        %v2027 = vadd.f32 %v2026, %v1998
        %v2028 = vadd.f32 %v2027, %v2001
        %v2029 = vadd.f32 %v2028, %v2004
        %v2030 = vadd.f32 %v2029, %v2007
        %v2031 = vadd.f32 %v2030, %v2010
        %v2032 = vrot.slane %v2031, 4
        %v2033 = vadd.f32 %v2031, %v2032
        %v2034 = vrot.slane %v2033, 2
        %v2035 = vadd.f32 %v2033, %v2034
        %v2036 = vrot.slane %v2035, 1
        %v2037 = vadd.f32 %v2035, %v2036
        %v2038 = vadd.f32 %v1990, %v1993
        %v2039 = vadd.f32 %v2038, %v1996
        %v2040 = vadd.f32 %v2039, %v1999
        %v2041 = vadd.f32 %v2040, %v2002
        %v2042 = vadd.f32 %v2041, %v2005
        %v2043 = vadd.f32 %v2042, %v2008
        %v2044 = vadd.f32 %v2043, %v2011
        %v2045 = vrot.slane %v2044, 4
        %v2046 = vadd.f32 %v2044, %v2045
        %v2047 = vrot.slane %v2046, 2
        %v2048 = vadd.f32 %v2046, %v2047
        %v2049 = vrot.slane %v2048, 1
        %v2050 = vadd.f32 %v2048, %v2049
        %s2051 = sld [smem:[#allocation2]]
        %v2052 = vstv %s2051
        %v2053 = vadd.f32 %v2024, %v2052
        %v2054 = vadd.f32 %v2037, %v2052
        %v2055 = vadd.f32 %v2050, %v2052
        %v2059 = vcombine.low %v2053, %v2054
        %v2061 = vunpack.c.l.s4 1966171168
        %v2062 = vunpack.c.0.s8 %v2061
        %v2063 = vlaneseq
        %v2064 = vshrl.u32 %v2063, 7
        %v2065 = vsub.s32 %v2062, %v2064
        %v2066 = vrot.slane %v2059, %v2065
        %v2068 = vunpack.c.l.s4 1966171168
        %v2069 = vunpack.c.0.s8 %v2068
        %v2070 = vlaneseq
        %v2071 = vshrl.u32 %v2070, 7
        %v2072 = vsub.s32 %v2069, %v2071
        %v2073 = vrot.slane %v2055, %v2072
        %v2074 = vcombine.low %v2066, %v2073
        %v2076 = vunpack.c.l.s4 1966171168
        %v2077 = vunpack.c.0.s8 %v2076
        %v2078 = vlaneseq
        %v2079 = vshrl.u32 %v2078, 7
        %v2080 = vsub.s32 %v2077, %v2079
        %v2081 = vrot.slane %v2074, %v2080
        %v2083 = vlaneseq
        %vm2084 = vcmp.ge.s32.totalorder %v2083, 0
        %vm2085 = vcmp.lt.s32.totalorder %v2083, 384
        %vm2086 = vmand %vm2084, %vm2085
        %2087 = vst.msk [vmem:[%s394] sm:$0x7] %vm2086, %v2081
        %s2088 = sand.u32 %s253, 1
        %s2089 = scalar_lea.sflag [#allocation4], %s2088
        %s2090 = sand.u32 %s253, 1
        %s2091 = smul.addr %s2090, 3
        %s2092 = scalar_lea.vmem [#allocation3], %s2091
        // Predicated region
        $region61: #{_lambda_.1} parent=59 // pred_check
          %p2093 = pneg %p263
        $region62: #{_lambda_.1} parent=59 // pred_check_branch
          %2095 = sbr.rel (%p2093) target = $region64
        $region63: #{_lambda_.1} parent=59 // pred_region
          %s2096 = smul.u32 3, %s25
          %s2097 = ssub.s32 5, %s2096
          %p2098 = scmp.lt.s32.totalorder %s2097, 3
          %s2099 = scalar_select %p2098, %s2097, 3
          %s2100 = smul.u32 16, %s2099
          %s2102 = ssub.s32 48, %s2100
          %2103 = vsyncadd %s2089, %s2102
          %p2104 = scmp.ne.s32.totalorder 0, %s2100
          %s2105 = smul.addr %s2096, 16
          %s2106 = scalar_lea.hbm %s10, %s2105
          %s2107 = sshll.u32 %s2099, 4
          %s2108 = sshll.u32 %s2092, 4
          %s2109 = int_to_ptr.vmem [resolvable:$true] %s2108
          %2111 = dma.vmem_to_hbm [thread:$0]  (%p2104), %s2109, %s2107, %s2106, %s2089
        $region64: #{_lambda_.1} parent=59 // pred_fallthru
          _
      $region60: #{_lambda_.1} parent=5 // pred_fallthru
        _
      %p2112 = scmp.le.s32.totalorder 2, %s20
      // Predicated region
      $region65: #{_lambda_.1} parent=5 // pred_check
        %p2113 = pneg %p2112
      $region66: #{_lambda_.1} parent=5 // pred_check_branch
        %2115 = sbr.rel (%p2113) target = $region68
      $region67: #{_lambda_.1} parent=5 // pred_region
        %s2116 = ssub.s32 %s20, 2
        // Predicated region
        $region69: #{_lambda_.1} parent=67 // pred_check
          %p2117 = pneg %p269
        $region70: #{_lambda_.1} parent=67 // pred_check_branch
          %2119 = sbr.rel (%p2117) target = $region72
        $region71: #{_lambda_.1} parent=67 // pred_region
          %s2120 = sand.u32 %s254, 1
          %s2121 = scalar_lea.sflag [#allocation4], %s2120
          %s2122 = sand.u32 %s254, 1
          %s2123 = smul.addr %s2122, 3
          %s2124 = scalar_lea.vmem [#allocation3], %s2123
          %2125 = dma.done %s2121, 48
        $region72: #{_lambda_.1} parent=67 // pred_fallthru
          _
      $region68: #{_lambda_.1} parent=5 // pred_fallthru
        _
    $region6: #{_lambda_.1} parent=1 // loop_footer
      %s24 = sadd.s32 1, %s20
    $region7: #{_lambda_.1} parent=1 // loop_footer_branch
      %19 = sbr.rel target = $region3
    $region8: #{_lambda_.1} parent=1 // loop_exit
      _
    %2126 = vsyncpa [#allocation4], 1
    %s2127 = scalar_lea.sflag [#allocation4], 1
    %2128 = vsyncpa %s2127, 1

</llo_original>
